<compile_context>
chip_gen: v7x
topology: tpu7x:2x2x1
jax: 0.10.0
libtpu: 0.0.40
codegen_flags: <defaults>
</compile_context>

<pallas_src>
import jax
import jax.numpy as jnp
from jax.experimental import pallas as pl
from jax.experimental.pallas import tpu as pltpu

IN_FEATURES = 3 * 32 * 32   # 3072
HIDDEN = 128
OUT = 10
OUT_PADDED = 128            # lane-dense output width (multiple of 128 lanes)
MAX_TILE_N = 512            # f32 x tiles: 2 x 6 MiB + weights + out << 48 MiB


def mlp_kernel(x_ref, w1_ref, b1_ref, w2_ref, b2_ref, o_ref):
    # x_ref:  (TILE_N, 3072)  f32   (streamed from HBM; cast to bf16 in-kernel)
    # w1_ref: (3072, 128)     bf16  (resident across the grid)
    # b1_ref: (1, 128)        f32
    # w2_ref: (128, 128)      f32   (zero-padded beyond column 10)
    # b2_ref: (1, 128)        f32   (zero-padded beyond column 10)
    # o_ref:  (TILE_N, 128)   f32
    x_bf = x_ref[...].astype(jnp.bfloat16)      # VPU cast; keeps MXU at bf16 rate
    h = jnp.dot(x_bf, w1_ref[...], preferred_element_type=jnp.float32)
    h = jnp.maximum(h + b1_ref[...], 0.0)                        # ReLU, f32
    y = jnp.dot(h, w2_ref[...], preferred_element_type=jnp.float32) + b2_ref[...]
    o_ref[...] = y.astype(o_ref.dtype)


def _round_up(a, b):
    return (a + b - 1) // b * b


def _choose_tile_n(n):
    """Batch tile: multiple of 8 sublanes (f32 x), capped at MAX_TILE_N, and
    sized so the grid has >= 2 steps when the batch allows (v7x megacore)."""
    if n <= 8:
        return 8
    half = _round_up(pl.cdiv(n, 2), 8)
    return min(MAX_TILE_N, half)


def net2_forward(x, w1, b1, w2, b2):
    """x: (N, 3, 32, 32) float32 -> logits (N, 10) float32."""
    n = x.shape[0]
    x_flat = x.reshape((n, IN_FEATURES))          # same semantics as torch reshape

    tile_n = _choose_tile_n(n)
    grid = (pl.cdiv(n, tile_n),)
    n_pad = grid[0] * tile_n                      # only the OUTPUT is padded

    # Small, one-time wrapper prep (weights only; x is passed through as f32).
    w1_bf = w1.astype(jnp.bfloat16)
    b1_2d = b1.reshape((1, HIDDEN)).astype(jnp.float32)
    # Lane-dense second layer: pad output columns 10 -> 128 with exact zeros.
    w2_p = jnp.zeros((HIDDEN, OUT_PADDED), jnp.float32).at[:, :OUT].set(w2)
    b2_p = jnp.zeros((1, OUT_PADDED), jnp.float32).at[:, :OUT].set(b2.astype(jnp.float32))

    flops = 2 * n_pad * IN_FEATURES * HIDDEN + 2 * n_pad * HIDDEN * OUT_PADDED
    bytes_accessed = (x_flat.size * 4             # x streamed once, as f32
                      + w1_bf.size * 2
                      + (b1_2d.size + w2_p.size + b2_p.size) * 4
                      + n_pad * OUT_PADDED * 4)   # padded output writeback

    out = pl.pallas_call(
        mlp_kernel,
        out_shape=jax.ShapeDtypeStruct((n_pad, OUT_PADDED), jnp.float32),
        grid_spec=pltpu.PrefetchScalarGridSpec(
            num_scalar_prefetch=0,
            grid=grid,
            in_specs=[
                pl.BlockSpec((tile_n, IN_FEATURES), lambda i: (i, 0)),  # x tile (pipelined; last block may be partial)
                pl.BlockSpec((IN_FEATURES, HIDDEN), lambda i: (0, 0)),  # w1 resident
                pl.BlockSpec((1, HIDDEN), lambda i: (0, 0)),            # b1 resident
                pl.BlockSpec((HIDDEN, OUT_PADDED), lambda i: (0, 0)),   # w2 resident
                pl.BlockSpec((1, OUT_PADDED), lambda i: (0, 0)),        # b2 resident
            ],
            out_specs=pl.BlockSpec((tile_n, OUT_PADDED), lambda i: (i, 0)),
        ),
        compiler_params=pltpu.CompilerParams(
            dimension_semantics=("parallel",),     # shard batch tiles across TCs (v7x)
            vmem_limit_bytes=48 << 20,             # headroom under v7x's 64 MiB/TC
        ),
        cost_estimate=pl.CostEstimate(
            flops=flops, transcendentals=0, bytes_accessed=bytes_accessed),
    )(x_flat, w1_bf, b1_2d, w2_p, b2_p)

    # Drop batch padding (don't-care rows from the partial last block) and the
    # zero-padded output lanes.
    return out[:n, :OUT]


def init_params(key):
    """Deterministic init mimicking nn.Linear default (uniform ±1/sqrt(fan_in))."""
    k1, k2, k3, k4 = jax.random.split(key, 4)
    bound1 = 1.0 / jnp.sqrt(jnp.float32(IN_FEATURES))
    bound2 = 1.0 / jnp.sqrt(jnp.float32(HIDDEN))
    # stored as (in, out) so the kernel does x @ W (equivalent to torch's x @ W.T)
    w1 = jax.random.uniform(k1, (IN_FEATURES, HIDDEN), jnp.float32, -bound1, bound1)
    b1 = jax.random.uniform(k2, (HIDDEN,), jnp.float32, -bound1, bound1)
    w2 = jax.random.uniform(k3, (HIDDEN, OUT), jnp.float32, -bound2, bound2)
    b2 = jax.random.uniform(k4, (OUT,), jnp.float32, -bound2, bound2)
    return w1, b1, w2, b2


# TODO(synk): Loss (softmax + CrossEntropyLoss) and TestOK (argmax accuracy)
# are training/eval utilities outside forward(); not implemented as kernels.

if __name__ == "__main__":
    key = jax.random.PRNGKey(0)
    kx, kp = jax.random.split(key)

    # Small batch; feature shape fixed by the module (3, 32, 32).
    N = 2
    x = jax.random.normal(kx, (N, 3, 32, 32), jnp.float32)
    w1, b1, w2, b2 = init_params(kp)

    logits = net2_forward(x, w1, b1, w2, b2)
    logits = jax.block_until_ready(logits)
    assert logits.shape == (N, OUT)

    # Reference 1: same bf16-x / bf16-w1 math with f32 accumulation (tight check).
    xf = x.reshape((N, IN_FEATURES))
    h_ref = jnp.dot(xf.astype(jnp.bfloat16), w1.astype(jnp.bfloat16),
                    preferred_element_type=jnp.float32) + b1
    ref_bf16 = jnp.maximum(h_ref, 0.0) @ w2 + b2
    assert jnp.allclose(logits, ref_bf16, atol=1e-3, rtol=1e-3)

    # Reference 2: pure-f32 PyTorch-equivalent forward (loose check for the
    # bf16 matmul-input cast).
    ref_f32 = jnp.maximum(xf @ w1 + b1, 0.0) @ w2 + b2
    assert jnp.allclose(logits, ref_f32, atol=3e-2, rtol=3e-2)

    print("KERNEL_OK")
</pallas_src>

<mosaic_0001>
module attributes {stable_mosaic.version = 11 : i64} {
  func.func @mlp_kernel(%arg0: i32, %arg1: memref<8x3072xf32, #tpu.memory_space<vmem>>, %arg2: memref<3072x128xbf16, #tpu.memory_space<vmem>>, %arg3: memref<1x128xf32, #tpu.memory_space<vmem>>, %arg4: memref<128x128xf32, #tpu.memory_space<vmem>>, %arg5: memref<1x128xf32, #tpu.memory_space<vmem>>, %arg6: memref<8x128xf32, #tpu.memory_space<vmem>>) attributes {dimension_semantics = [#tpu.dimension_semantics<parallel>], iteration_bounds = array<i64: 1>, scalar_prefetch = 0 : i64, scratch_operands = 0 : i64, tpu.core_type = #tpu.core_type<tc>, window_params = [{transform_indices = @transform_0, window_bounds = array<i64: 8, 3072>}, {pipeline_mode = #tpu.pipeline_mode<synchronous>, transform_indices = @transform_1, window_bounds = array<i64: 3072, 128>}, {pipeline_mode = #tpu.pipeline_mode<synchronous>, transform_indices = @transform_2, window_bounds = array<i64: 1, 128>}, {pipeline_mode = #tpu.pipeline_mode<synchronous>, transform_indices = @transform_3, window_bounds = array<i64: 128, 128>}, {pipeline_mode = #tpu.pipeline_mode<synchronous>, transform_indices = @transform_4, window_bounds = array<i64: 1, 128>}, {transform_indices = @transform_5, window_bounds = array<i64: 8, 128>}]} {
    %c0 = arith.constant 0 : index
    %c0_0 = arith.constant 0 : index
    %0 = vector.load %arg1[%c0, %c0_0] : memref<8x3072xf32, #tpu.memory_space<vmem>>, vector<8x3072xf32>
    %1 = arith.truncf %0 : vector<8x3072xf32> to vector<8x3072xbf16>
    %c0_1 = arith.constant 0 : index
    %c0_2 = arith.constant 0 : index
    %2 = vector.load %arg2[%c0_1, %c0_2] : memref<3072x128xbf16, #tpu.memory_space<vmem>>, vector<3072x128xbf16>
    %cst = arith.constant dense<0.000000e+00> : vector<8x128xf32>
    %3 = tpu.matmul %1, %2, %cst {dimension_numbers = #tpu.dot_dimension_numbers<[1], [0], [0], [1], [0, 0, 1, 1], [], []>} : vector<8x3072xbf16>, vector<3072x128xbf16>, vector<8x128xf32> -> vector<8x128xf32>
    %c0_3 = arith.constant 0 : index
    %c0_4 = arith.constant 0 : index
    %4 = vector.load %arg3[%c0_3, %c0_4] : memref<1x128xf32, #tpu.memory_space<vmem>>, vector<1x128xf32>
    %5 = vector.broadcast %4 : vector<1x128xf32> to vector<8x128xf32>
    %6 = arith.addf %3, %5 : vector<8x128xf32>
    %cst_5 = arith.constant 0.000000e+00 : f32
    %7 = vector.broadcast %cst_5 : f32 to vector<8x128xf32>
    %8 = arith.maximumf %6, %7 : vector<8x128xf32>
    %c0_6 = arith.constant 0 : index
    %c0_7 = arith.constant 0 : index
    %9 = vector.load %arg4[%c0_6, %c0_7] : memref<128x128xf32, #tpu.memory_space<vmem>>, vector<128x128xf32>
    %cst_8 = arith.constant dense<0.000000e+00> : vector<8x128xf32>
    %10 = tpu.matmul %8, %9, %cst_8 {dimension_numbers = #tpu.dot_dimension_numbers<[1], [0], [0], [1], [0, 0, 1, 1], [], []>} : vector<8x128xf32>, vector<128x128xf32>, vector<8x128xf32> -> vector<8x128xf32>
    %c0_9 = arith.constant 0 : index
    %c0_10 = arith.constant 0 : index
    %11 = vector.load %arg5[%c0_9, %c0_10] : memref<1x128xf32, #tpu.memory_space<vmem>>, vector<1x128xf32>
    %12 = vector.broadcast %11 : vector<1x128xf32> to vector<8x128xf32>
    %13 = arith.addf %10, %12 : vector<8x128xf32>
    %c0_11 = arith.constant 0 : index
    %c0_12 = arith.constant 0 : index
    %14 = vector.load %arg6[%c0_11, %c0_12] : memref<8x128xf32, #tpu.memory_space<vmem>>, vector<8x128xf32>
    tpu.vector_store %arg6[%c0_11, %c0_12], %13 {strides = array<i32>} : memref<8x128xf32, #tpu.memory_space<vmem>>, vector<8x128xf32>,
    return
  }
  func.func @transform_0(%arg0: i32) -> (i32, i32) {
    %c0_i32 = arith.constant 0 : i32
    %c0_i32_0 = arith.constant 0 : i32
    return %arg0, %c0_i32 : i32, i32
  }
  func.func @transform_1(%arg0: i32) -> (i32, i32) {
    %c0_i32 = arith.constant 0 : i32
    %c0_i32_0 = arith.constant 0 : i32
    %c0_i32_1 = arith.constant 0 : i32
    return %c0_i32, %c0_i32_0 : i32, i32
  }
  func.func @transform_2(%arg0: i32) -> (i32, i32) {
    %c0_i32 = arith.constant 0 : i32
    %c0_i32_0 = arith.constant 0 : i32
    %c0_i32_1 = arith.constant 0 : i32
    return %c0_i32, %c0_i32_0 : i32, i32
  }
  func.func @transform_3(%arg0: i32) -> (i32, i32) {
    %c0_i32 = arith.constant 0 : i32
    %c0_i32_0 = arith.constant 0 : i32
    %c0_i32_1 = arith.constant 0 : i32
    return %c0_i32, %c0_i32_0 : i32, i32
  }
  func.func @transform_4(%arg0: i32) -> (i32, i32) {
    %c0_i32 = arith.constant 0 : i32
    %c0_i32_0 = arith.constant 0 : i32
    %c0_i32_1 = arith.constant 0 : i32
    return %c0_i32, %c0_i32_0 : i32, i32
  }
  func.func @transform_5(%arg0: i32) -> (i32, i32) {
    %c0_i32 = arith.constant 0 : i32
    %c0_i32_0 = arith.constant 0 : i32
    return %arg0, %c0_i32 : i32, i32
  }
}

</mosaic_0001>

<llo_original>
// kernel: tpu_custom_call.1
$region0: #{tpu_custom_call.1}
  #allocation0 [shape = 'u32[]', space=smem, size = 0x4, offset = 0x4, fixed_abs, tag = 'smem constant byte address 0x4 - core index']
  #allocation1 [shape = 'u32[144,128]{1,0:T(1,128)}', space=vmem, size = 0x12000, scoped, tag = 'internal scratch']
  %s0 = inlined_call_operand.hbm [shape: f32[2,3072], index: 0, kind: input, shape index: {}]
  %s1 = inlined_call_operand.hbm [shape: bf16[3072,128], index: 1, kind: input, shape index: {}]
  %s2 = inlined_call_operand.vmem [shape: f32[1,128], index: 2, kind: input, shape index: {}]
  %s3 = inlined_call_operand.hbm [shape: f32[128,128], index: 3, kind: input, shape index: {}]
  %s4 = inlined_call_operand.vmem [shape: f32[1,128], index: 4, kind: input, shape index: {}]
  %s5 = inlined_call_operand.hbm [shape: f32[8,128], index: 5, kind: output, shape index: {}]
  %s6 = sld [smem:[#allocation0]]
  $region42: #{tpu_custom_call.1} parent=0
    _
  %s8 = ssub.s32 1, %s6
  %s9 = scalar_select 0, %s8, %s6
  $region1: #{tpu_custom_call.1} parent=0
    #allocation2 [shape = 'u8[98304]{0}', space=vmem, size = 0x18000, scoped, tag = 'input window, operand 0, single buffered']
    #allocation3 [shape = 's32[1]{0}', space=sflag, size = 0x4, scoped, tag = 'scoped memory for tpu_custom_call.1']
    #allocation4 [shape = 's32[1]{0}', space=sflag, size = 0x4, scoped, tag = 'scoped memory for tpu_custom_call.1']
    #allocation5 [shape = 'u8[786432]{0}', space=vmem, size = 0xc0000, scoped, tag = 'input window, operand 1, single buffered']
    #allocation6 [shape = 's32[1]{0}', space=sflag, size = 0x4, scoped, tag = 'scoped memory for tpu_custom_call.1']
    #allocation7 [shape = 'u8[65536]{0}', space=vmem, size = 0x10000, scoped, tag = 'input window, operand 3, single buffered']
    #allocation8 [shape = 'u8[4096]{0}', space=vmem, size = 0x1000, scoped, tag = 'output window, operand 0, single buffered']
    %10 = vsyncpa [#allocation3], 0
    %11 = vsyncpa [#allocation6], 0
    %12 = vsyncpa [#allocation4], 0
    // Predicated region
    $region2: #{tpu_custom_call.1} parent=1 // pred_check
      _
    $region3: #{tpu_custom_call.1} parent=1 // pred_check_branch
      %14 = sbr.rel (0) target = $region5
    $region4: #{tpu_custom_call.1} parent=1 // pred_region
      %s16 = ssub.s32 3072, 768
      %17 = vsyncadd [#allocation3], %s16
      %s18 = sshll.u32 [#allocation2], 4
      %s19 = int_to_ptr.vmem [resolvable:$true] %s18
      %24 = dma.hbm_to_vmem [thread:$0]  %s0, 768, %s19, [#allocation3], 768, 768, 48
    $region5: #{tpu_custom_call.1} parent=1 // pred_fallthru
      _
    // Predicated region
    $region6: #{tpu_custom_call.1} parent=1 // pred_check
      _
    $region7: #{tpu_custom_call.1} parent=1 // pred_check_branch
      %26 = sbr.rel (0) target = $region9
    $region8: #{tpu_custom_call.1} parent=1 // pred_region
      %s28 = ssub.s32 24576, 24576
      %29 = vsyncadd [#allocation6], %s28
      %s30 = sshll.u32 [#allocation5], 4
      %s31 = int_to_ptr.vmem [resolvable:$true] %s30
      %36 = dma.hbm_to_vmem [thread:$0]  %s1, 24576, %s31, [#allocation6], 64, 64, 4
    $region9: #{tpu_custom_call.1} parent=1 // pred_fallthru
      _
    // Predicated region
    $region10: #{tpu_custom_call.1} parent=1 // pred_check
      _
    $region11: #{tpu_custom_call.1} parent=1 // pred_check_branch
      %38 = sbr.rel (0) target = $region13
    $region12: #{tpu_custom_call.1} parent=1 // pred_region
      _
    $region13: #{tpu_custom_call.1} parent=1 // pred_fallthru
      _
    // Predicated region
    $region14: #{tpu_custom_call.1} parent=1 // pred_check
      _
    $region15: #{tpu_custom_call.1} parent=1 // pred_check_branch
      %40 = sbr.rel (0) target = $region17
    $region16: #{tpu_custom_call.1} parent=1 // pred_region
      %s42 = ssub.s32 2048, 2048
      %43 = vsyncadd [#allocation6], %s42
      %s44 = sshll.u32 [#allocation7], 4
      %s45 = int_to_ptr.vmem [resolvable:$true] %s44
      %50 = dma.hbm_to_vmem [thread:$0]  %s3, 2048, %s45, [#allocation6], 128, 128, 8
    $region17: #{tpu_custom_call.1} parent=1 // pred_fallthru
      _
    // Predicated region
    $region18: #{tpu_custom_call.1} parent=1 // pred_check
      _
    $region19: #{tpu_custom_call.1} parent=1 // pred_check_branch
      %52 = sbr.rel (0) target = $region21
    $region20: #{tpu_custom_call.1} parent=1 // pred_region
      _
    $region21: #{tpu_custom_call.1} parent=1 // pred_fallthru
      _
    // Predicated region
    $region22: #{tpu_custom_call.1} parent=1 // pred_check
      _
    $region23: #{tpu_custom_call.1} parent=1 // pred_check_branch
      %54 = sbr.rel (0) target = $region25
    $region24: #{tpu_custom_call.1} parent=1 // pred_region
      %55 = dma.done [#allocation3], 3072
    $region25: #{tpu_custom_call.1} parent=1 // pred_fallthru
      _
    // Predicated region
    $region26: #{tpu_custom_call.1} parent=1 // pred_check
      _
    $region27: #{tpu_custom_call.1} parent=1 // pred_check_branch
      %57 = sbr.rel (0) target = $region29
    $region28: #{tpu_custom_call.1} parent=1 // pred_region
      %58 = dma.done [#allocation6], 24576
    $region29: #{tpu_custom_call.1} parent=1 // pred_fallthru
      _
    // Predicated region
    $region30: #{tpu_custom_call.1} parent=1 // pred_check
      _
    $region31: #{tpu_custom_call.1} parent=1 // pred_check_branch
      %60 = sbr.rel (0) target = $region33
    $region32: #{tpu_custom_call.1} parent=1 // pred_region
      %61 = dma.done [#allocation6], 2048
    $region33: #{tpu_custom_call.1} parent=1 // pred_fallthru
      _
    %v63 = vld [vmem:[#allocation2] sm:$0xff]
    %v64 = vld [vmem:[#allocation2 + $0x8] sm:$0xff]
    %v65 = vld [vmem:[#allocation2 + $0x10] sm:$0xff]
    %v66 = vld [vmem:[#allocation2 + $0x18] sm:$0xff]
    %v67 = vld [vmem:[#allocation2 + $0x20] sm:$0xff]
    %v68 = vld [vmem:[#allocation2 + $0x28] sm:$0xff]
    %v69 = vld [vmem:[#allocation2 + $0x30] sm:$0xff]
    %v70 = vld [vmem:[#allocation2 + $0x38] sm:$0xff]
    %v71 = vld [vmem:[#allocation2 + $0x40] sm:$0xff]
    %v72 = vld [vmem:[#allocation2 + $0x48] sm:$0xff]
    %v73 = vld [vmem:[#allocation2 + $0x50] sm:$0xff]
    %v74 = vld [vmem:[#allocation2 + $0x58] sm:$0xff]
    %v75 = vld [vmem:[#allocation2 + $0x60] sm:$0xff]
    %v76 = vld [vmem:[#allocation2 + $0x68] sm:$0xff]
    %v77 = vld [vmem:[#allocation2 + $0x70] sm:$0xff]
    %v78 = vld [vmem:[#allocation2 + $0x78] sm:$0xff]
    %v79 = vld [vmem:[#allocation2 + $0x80] sm:$0xff]
    %v80 = vld [vmem:[#allocation2 + $0x88] sm:$0xff]
    %v81 = vld [vmem:[#allocation2 + $0x90] sm:$0xff]
    %v82 = vld [vmem:[#allocation2 + $0x98] sm:$0xff]
    %v83 = vld [vmem:[#allocation2 + $0xa0] sm:$0xff]
    %v84 = vld [vmem:[#allocation2 + $0xa8] sm:$0xff]
    %v85 = vld [vmem:[#allocation2 + $0xb0] sm:$0xff]
    %v86 = vld [vmem:[#allocation2 + $0xb8] sm:$0xff]
    %v111 = vcombine.low %v63, %v69
    %v112 = vcombine.high %v63, %v69
    %v113 = vcombine.low %v75, %v81
    %v114 = vcombine.high %v75, %v81
    %v116 = vunpack.c.l.s4 1983009808
    %v117 = vunpack.c.0.s8 %v116
    %v118 = vlaneseq
    %v119 = vshrl.u32 %v118, 7
    %v120 = vsub.s32 %v117, %v119
    %v121 = vrot.slane %v111, %v120
    %v123 = vunpack.c.l.s4 1983009808
    %v124 = vunpack.c.0.s8 %v123
    %v125 = vlaneseq
    %v126 = vshrl.u32 %v125, 7
    %v127 = vsub.s32 %v124, %v126
    %v128 = vrot.slane %v112, %v127
    %v130 = vunpack.c.l.s4 1983009808
    %v131 = vunpack.c.0.s8 %v130
    %v132 = vlaneseq
    %v133 = vshrl.u32 %v132, 7
    %v134 = vsub.s32 %v131, %v133
    %v135 = vrot.slane %v113, %v134
    %v137 = vunpack.c.l.s4 1983009808
    %v138 = vunpack.c.0.s8 %v137
    %v139 = vlaneseq
    %v140 = vshrl.u32 %v139, 7
    %v141 = vsub.s32 %v138, %v140
    %v142 = vrot.slane %v114, %v141
    %v143 = vcombine.low %v121, %v135
    %v144 = vcombine.high %v121, %v135
    %v145 = vcombine.low %v128, %v142
    %v146 = vcombine.high %v128, %v142
    %v147 = vcombine.low %v64, %v70
    %v148 = vcombine.high %v64, %v70
    %v149 = vcombine.low %v76, %v82
    %v150 = vcombine.high %v76, %v82
    %v152 = vunpack.c.l.s4 1983009808
    %v153 = vunpack.c.0.s8 %v152
    %v154 = vlaneseq
    %v155 = vshrl.u32 %v154, 7
    %v156 = vsub.s32 %v153, %v155
    %v157 = vrot.slane %v147, %v156
    %v159 = vunpack.c.l.s4 1983009808
    %v160 = vunpack.c.0.s8 %v159
    %v161 = vlaneseq
    %v162 = vshrl.u32 %v161, 7
    %v163 = vsub.s32 %v160, %v162
    %v164 = vrot.slane %v148, %v163
    %v166 = vunpack.c.l.s4 1983009808
    %v167 = vunpack.c.0.s8 %v166
    %v168 = vlaneseq
    %v169 = vshrl.u32 %v168, 7
    %v170 = vsub.s32 %v167, %v169
    %v171 = vrot.slane %v149, %v170
    %v173 = vunpack.c.l.s4 1983009808
    %v174 = vunpack.c.0.s8 %v173
    %v175 = vlaneseq
    %v176 = vshrl.u32 %v175, 7
    %v177 = vsub.s32 %v174, %v176
    %v178 = vrot.slane %v150, %v177
    %v179 = vcombine.low %v157, %v171
    %v180 = vcombine.high %v157, %v171
    %v181 = vcombine.low %v164, %v178
    %v182 = vcombine.high %v164, %v178
    %v183 = vcombine.low %v65, %v71
    %v184 = vcombine.high %v65, %v71
    %v185 = vcombine.low %v77, %v83
    %v186 = vcombine.high %v77, %v83
    %v188 = vunpack.c.l.s4 1983009808
    %v189 = vunpack.c.0.s8 %v188
    %v190 = vlaneseq
    %v191 = vshrl.u32 %v190, 7
    %v192 = vsub.s32 %v189, %v191
    %v193 = vrot.slane %v183, %v192
    %v195 = vunpack.c.l.s4 1983009808
    %v196 = vunpack.c.0.s8 %v195
    %v197 = vlaneseq
    %v198 = vshrl.u32 %v197, 7
    %v199 = vsub.s32 %v196, %v198
    %v200 = vrot.slane %v184, %v199
    %v202 = vunpack.c.l.s4 1983009808
    %v203 = vunpack.c.0.s8 %v202
    %v204 = vlaneseq
    %v205 = vshrl.u32 %v204, 7
    %v206 = vsub.s32 %v203, %v205
    %v207 = vrot.slane %v185, %v206
    %v209 = vunpack.c.l.s4 1983009808
    %v210 = vunpack.c.0.s8 %v209
    %v211 = vlaneseq
    %v212 = vshrl.u32 %v211, 7
    %v213 = vsub.s32 %v210, %v212
    %v214 = vrot.slane %v186, %v213
    %v215 = vcombine.low %v193, %v207
    %v216 = vcombine.high %v193, %v207
    %v217 = vcombine.low %v200, %v214
    %v218 = vcombine.high %v200, %v214
    %v219 = vcombine.low %v66, %v72
    %v220 = vcombine.high %v66, %v72
    %v221 = vcombine.low %v78, %v84
    %v222 = vcombine.high %v78, %v84
    %v224 = vunpack.c.l.s4 1983009808
    %v225 = vunpack.c.0.s8 %v224
    %v226 = vlaneseq
    %v227 = vshrl.u32 %v226, 7
    %v228 = vsub.s32 %v225, %v227
    %v229 = vrot.slane %v219, %v228
    %v231 = vunpack.c.l.s4 1983009808
    %v232 = vunpack.c.0.s8 %v231
    %v233 = vlaneseq
    %v234 = vshrl.u32 %v233, 7
    %v235 = vsub.s32 %v232, %v234
    %v236 = vrot.slane %v220, %v235
    %v238 = vunpack.c.l.s4 1983009808
    %v239 = vunpack.c.0.s8 %v238
    %v240 = vlaneseq
    %v241 = vshrl.u32 %v240, 7
    %v242 = vsub.s32 %v239, %v241
    %v243 = vrot.slane %v221, %v242
    %v245 = vunpack.c.l.s4 1983009808
    %v246 = vunpack.c.0.s8 %v245
    %v247 = vlaneseq
    %v248 = vshrl.u32 %v247, 7
    %v249 = vsub.s32 %v246, %v248
    %v250 = vrot.slane %v222, %v249
    %v251 = vcombine.low %v229, %v243
    %v252 = vcombine.high %v229, %v243
    %v253 = vcombine.low %v236, %v250
    %v254 = vcombine.high %v236, %v250
    %v255 = vcombine.low %v67, %v73
    %v256 = vcombine.high %v67, %v73
    %v257 = vcombine.low %v79, %v85
    %v258 = vcombine.high %v79, %v85
    %v260 = vunpack.c.l.s4 1983009808
    %v261 = vunpack.c.0.s8 %v260
    %v262 = vlaneseq
    %v263 = vshrl.u32 %v262, 7
    %v264 = vsub.s32 %v261, %v263
    %v265 = vrot.slane %v255, %v264
    %v267 = vunpack.c.l.s4 1983009808
    %v268 = vunpack.c.0.s8 %v267
    %v269 = vlaneseq
    %v270 = vshrl.u32 %v269, 7
    %v271 = vsub.s32 %v268, %v270
    %v272 = vrot.slane %v256, %v271
    %v274 = vunpack.c.l.s4 1983009808
    %v275 = vunpack.c.0.s8 %v274
    %v276 = vlaneseq
    %v277 = vshrl.u32 %v276, 7
    %v278 = vsub.s32 %v275, %v277
    %v279 = vrot.slane %v257, %v278
    %v281 = vunpack.c.l.s4 1983009808
    %v282 = vunpack.c.0.s8 %v281
    %v283 = vlaneseq
    %v284 = vshrl.u32 %v283, 7
    %v285 = vsub.s32 %v282, %v284
    %v286 = vrot.slane %v258, %v285
    %v287 = vcombine.low %v265, %v279
    %v288 = vcombine.high %v265, %v279
    %v289 = vcombine.low %v272, %v286
    %v290 = vcombine.high %v272, %v286
    %v291 = vcombine.low %v68, %v74
    %v292 = vcombine.high %v68, %v74
    %v293 = vcombine.low %v80, %v86
    %v294 = vcombine.high %v80, %v86
    %v296 = vunpack.c.l.s4 1983009808
    %v297 = vunpack.c.0.s8 %v296
    %v298 = vlaneseq
    %v299 = vshrl.u32 %v298, 7
    %v300 = vsub.s32 %v297, %v299
    %v301 = vrot.slane %v291, %v300
    %v303 = vunpack.c.l.s4 1983009808
    %v304 = vunpack.c.0.s8 %v303
    %v305 = vlaneseq
    %v306 = vshrl.u32 %v305, 7
    %v307 = vsub.s32 %v304, %v306
    %v308 = vrot.slane %v292, %v307
    %v310 = vunpack.c.l.s4 1983009808
    %v311 = vunpack.c.0.s8 %v310
    %v312 = vlaneseq
    %v313 = vshrl.u32 %v312, 7
    %v314 = vsub.s32 %v311, %v313
    %v315 = vrot.slane %v293, %v314
    %v317 = vunpack.c.l.s4 1983009808
    %v318 = vunpack.c.0.s8 %v317
    %v319 = vlaneseq
    %v320 = vshrl.u32 %v319, 7
    %v321 = vsub.s32 %v318, %v320
    %v322 = vrot.slane %v294, %v321
    %v323 = vcombine.low %v301, %v315
    %v324 = vcombine.high %v301, %v315
    %v325 = vcombine.low %v308, %v322
    %v326 = vcombine.high %v308, %v322
    %v351 = vpack.c.bf16 %v143, %v143
    %v352 = vpack.c.bf16 %v144, %v144
    %v353 = vpack.c.bf16 %v145, %v145
    %v354 = vpack.c.bf16 %v146, %v146
    %v355 = vpack.c.bf16 %v179, %v179
    %v356 = vpack.c.bf16 %v180, %v180
    %v357 = vpack.c.bf16 %v181, %v181
    %v358 = vpack.c.bf16 %v182, %v182
    %v359 = vpack.c.bf16 %v215, %v215
    %v360 = vpack.c.bf16 %v216, %v216
    %v361 = vpack.c.bf16 %v217, %v217
    %v362 = vpack.c.bf16 %v218, %v218
    %v363 = vpack.c.bf16 %v251, %v251
    %v364 = vpack.c.bf16 %v252, %v252
    %v365 = vpack.c.bf16 %v253, %v253
    %v366 = vpack.c.bf16 %v254, %v254
    %v367 = vpack.c.bf16 %v287, %v287
    %v368 = vpack.c.bf16 %v288, %v288
    %v369 = vpack.c.bf16 %v289, %v289
    %v370 = vpack.c.bf16 %v290, %v290
    %v371 = vpack.c.bf16 %v323, %v323
    %v372 = vpack.c.bf16 %v324, %v324
    %v373 = vpack.c.bf16 %v325, %v325
    %v374 = vpack.c.bf16 %v326, %v326
    %v375 = vld [vmem:[#allocation5] sm:$0xf]
    %v376 = vld [vmem:[#allocation5 + $0x4] sm:$0xf]
    %v377 = vld [vmem:[#allocation5 + $0x8] sm:$0xf]
    %v378 = vld [vmem:[#allocation5 + $0xc] sm:$0xf]
    %v379 = vld [vmem:[#allocation5 + $0x10] sm:$0xf]
    %v380 = vld [vmem:[#allocation5 + $0x14] sm:$0xf]
    %v381 = vld [vmem:[#allocation5 + $0x18] sm:$0xf]
    %v382 = vld [vmem:[#allocation5 + $0x1c] sm:$0xf]
    %v383 = vld [vmem:[#allocation5 + $0x20] sm:$0xf]
    %v384 = vld [vmem:[#allocation5 + $0x24] sm:$0xf]
    %v385 = vld [vmem:[#allocation5 + $0x28] sm:$0xf]
    %v386 = vld [vmem:[#allocation5 + $0x2c] sm:$0xf]
    %v387 = vld [vmem:[#allocation5 + $0x30] sm:$0xf]
    %v388 = vld [vmem:[#allocation5 + $0x34] sm:$0xf]
    %v389 = vld [vmem:[#allocation5 + $0x38] sm:$0xf]
    %v390 = vld [vmem:[#allocation5 + $0x3c] sm:$0xf]
    %v391 = vld [vmem:[#allocation5 + $0x40] sm:$0xf]
    %v392 = vld [vmem:[#allocation5 + $0x44] sm:$0xf]
    %v393 = vld [vmem:[#allocation5 + $0x48] sm:$0xf]
    %v394 = vld [vmem:[#allocation5 + $0x4c] sm:$0xf]
    %v395 = vld [vmem:[#allocation5 + $0x50] sm:$0xf]
    %v396 = vld [vmem:[#allocation5 + $0x54] sm:$0xf]
    %v397 = vld [vmem:[#allocation5 + $0x58] sm:$0xf]
    %v398 = vld [vmem:[#allocation5 + $0x5c] sm:$0xf]
    %v399 = vld [vmem:[#allocation5 + $0x60] sm:$0xf]
    %v400 = vld [vmem:[#allocation5 + $0x64] sm:$0xf]
    %v401 = vld [vmem:[#allocation5 + $0x68] sm:$0xf]
    %v402 = vld [vmem:[#allocation5 + $0x6c] sm:$0xf]
    %v403 = vld [vmem:[#allocation5 + $0x70] sm:$0xf]
    %v404 = vld [vmem:[#allocation5 + $0x74] sm:$0xf]
    %v405 = vld [vmem:[#allocation5 + $0x78] sm:$0xf]
    %v406 = vld [vmem:[#allocation5 + $0x7c] sm:$0xf]
    %v407 = vld [vmem:[#allocation5 + $0x80] sm:$0xf]
    %v408 = vld [vmem:[#allocation5 + $0x84] sm:$0xf]
    %v409 = vld [vmem:[#allocation5 + $0x88] sm:$0xf]
    %v410 = vld [vmem:[#allocation5 + $0x8c] sm:$0xf]
    %v411 = vld [vmem:[#allocation5 + $0x90] sm:$0xf]
    %v412 = vld [vmem:[#allocation5 + $0x94] sm:$0xf]
    %v413 = vld [vmem:[#allocation5 + $0x98] sm:$0xf]
    %v414 = vld [vmem:[#allocation5 + $0x9c] sm:$0xf]
    %v415 = vld [vmem:[#allocation5 + $0xa0] sm:$0xf]
    %v416 = vld [vmem:[#allocation5 + $0xa4] sm:$0xf]
    %v417 = vld [vmem:[#allocation5 + $0xa8] sm:$0xf]
    %v418 = vld [vmem:[#allocation5 + $0xac] sm:$0xf]
    %v419 = vld [vmem:[#allocation5 + $0xb0] sm:$0xf]
    %v420 = vld [vmem:[#allocation5 + $0xb4] sm:$0xf]
    %v421 = vld [vmem:[#allocation5 + $0xb8] sm:$0xf]
    %v422 = vld [vmem:[#allocation5 + $0xbc] sm:$0xf]
    %v423 = vld [vmem:[#allocation5 + $0xc0] sm:$0xf]
    %v424 = vld [vmem:[#allocation5 + $0xc4] sm:$0xf]
    %v425 = vld [vmem:[#allocation5 + $0xc8] sm:$0xf]
    %v426 = vld [vmem:[#allocation5 + $0xcc] sm:$0xf]
    %v427 = vld [vmem:[#allocation5 + $0xd0] sm:$0xf]
    %v428 = vld [vmem:[#allocation5 + $0xd4] sm:$0xf]
    %v429 = vld [vmem:[#allocation5 + $0xd8] sm:$0xf]
    %v430 = vld [vmem:[#allocation5 + $0xdc] sm:$0xf]
    %v431 = vld [vmem:[#allocation5 + $0xe0] sm:$0xf]
    %v432 = vld [vmem:[#allocation5 + $0xe4] sm:$0xf]
    %v433 = vld [vmem:[#allocation5 + $0xe8] sm:$0xf]
    %v434 = vld [vmem:[#allocation5 + $0xec] sm:$0xf]
    %v435 = vld [vmem:[#allocation5 + $0xf0] sm:$0xf]
    %v436 = vld [vmem:[#allocation5 + $0xf4] sm:$0xf]
    %v437 = vld [vmem:[#allocation5 + $0xf8] sm:$0xf]
    %v438 = vld [vmem:[#allocation5 + $0xfc] sm:$0xf]
    %v439 = vld [vmem:[#allocation5 + $0x100] sm:$0xf]
    %v440 = vld [vmem:[#allocation5 + $0x104] sm:$0xf]
    %v441 = vld [vmem:[#allocation5 + $0x108] sm:$0xf]
    %v442 = vld [vmem:[#allocation5 + $0x10c] sm:$0xf]
    %v443 = vld [vmem:[#allocation5 + $0x110] sm:$0xf]
    %v444 = vld [vmem:[#allocation5 + $0x114] sm:$0xf]
    %v445 = vld [vmem:[#allocation5 + $0x118] sm:$0xf]
    %v446 = vld [vmem:[#allocation5 + $0x11c] sm:$0xf]
    %v447 = vld [vmem:[#allocation5 + $0x120] sm:$0xf]
    %v448 = vld [vmem:[#allocation5 + $0x124] sm:$0xf]
    %v449 = vld [vmem:[#allocation5 + $0x128] sm:$0xf]
    %v450 = vld [vmem:[#allocation5 + $0x12c] sm:$0xf]
    %v451 = vld [vmem:[#allocation5 + $0x130] sm:$0xf]
    %v452 = vld [vmem:[#allocation5 + $0x134] sm:$0xf]
    %v453 = vld [vmem:[#allocation5 + $0x138] sm:$0xf]
    %v454 = vld [vmem:[#allocation5 + $0x13c] sm:$0xf]
    %v455 = vld [vmem:[#allocation5 + $0x140] sm:$0xf]
    %v456 = vld [vmem:[#allocation5 + $0x144] sm:$0xf]
    %v457 = vld [vmem:[#allocation5 + $0x148] sm:$0xf]
    %v458 = vld [vmem:[#allocation5 + $0x14c] sm:$0xf]
    %v459 = vld [vmem:[#allocation5 + $0x150] sm:$0xf]
    %v460 = vld [vmem:[#allocation5 + $0x154] sm:$0xf]
    %v461 = vld [vmem:[#allocation5 + $0x158] sm:$0xf]
    %v462 = vld [vmem:[#allocation5 + $0x15c] sm:$0xf]
    %v463 = vld [vmem:[#allocation5 + $0x160] sm:$0xf]
    %v464 = vld [vmem:[#allocation5 + $0x164] sm:$0xf]
    %v465 = vld [vmem:[#allocation5 + $0x168] sm:$0xf]
    %v466 = vld [vmem:[#allocation5 + $0x16c] sm:$0xf]
    %v467 = vld [vmem:[#allocation5 + $0x170] sm:$0xf]
    %v468 = vld [vmem:[#allocation5 + $0x174] sm:$0xf]
    %v469 = vld [vmem:[#allocation5 + $0x178] sm:$0xf]
    %v470 = vld [vmem:[#allocation5 + $0x17c] sm:$0xf]
    %v471 = vld [vmem:[#allocation5 + $0x180] sm:$0xf]
    %v472 = vld [vmem:[#allocation5 + $0x184] sm:$0xf]
    %v473 = vld [vmem:[#allocation5 + $0x188] sm:$0xf]
    %v474 = vld [vmem:[#allocation5 + $0x18c] sm:$0xf]
    %v475 = vld [vmem:[#allocation5 + $0x190] sm:$0xf]
    %v476 = vld [vmem:[#allocation5 + $0x194] sm:$0xf]
    %v477 = vld [vmem:[#allocation5 + $0x198] sm:$0xf]
    %v478 = vld [vmem:[#allocation5 + $0x19c] sm:$0xf]
    %v479 = vld [vmem:[#allocation5 + $0x1a0] sm:$0xf]
    %v480 = vld [vmem:[#allocation5 + $0x1a4] sm:$0xf]
    %v481 = vld [vmem:[#allocation5 + $0x1a8] sm:$0xf]
    %v482 = vld [vmem:[#allocation5 + $0x1ac] sm:$0xf]
    %v483 = vld [vmem:[#allocation5 + $0x1b0] sm:$0xf]
    %v484 = vld [vmem:[#allocation5 + $0x1b4] sm:$0xf]
    %v485 = vld [vmem:[#allocation5 + $0x1b8] sm:$0xf]
    %v486 = vld [vmem:[#allocation5 + $0x1bc] sm:$0xf]
    %v487 = vld [vmem:[#allocation5 + $0x1c0] sm:$0xf]
    %v488 = vld [vmem:[#allocation5 + $0x1c4] sm:$0xf]
    %v489 = vld [vmem:[#allocation5 + $0x1c8] sm:$0xf]
    %v490 = vld [vmem:[#allocation5 + $0x1cc] sm:$0xf]
    %v491 = vld [vmem:[#allocation5 + $0x1d0] sm:$0xf]
    %v492 = vld [vmem:[#allocation5 + $0x1d4] sm:$0xf]
    %v493 = vld [vmem:[#allocation5 + $0x1d8] sm:$0xf]
    %v494 = vld [vmem:[#allocation5 + $0x1dc] sm:$0xf]
    %v495 = vld [vmem:[#allocation5 + $0x1e0] sm:$0xf]
    %v496 = vld [vmem:[#allocation5 + $0x1e4] sm:$0xf]
    %v497 = vld [vmem:[#allocation5 + $0x1e8] sm:$0xf]
    %v498 = vld [vmem:[#allocation5 + $0x1ec] sm:$0xf]
    %v499 = vld [vmem:[#allocation5 + $0x1f0] sm:$0xf]
    %v500 = vld [vmem:[#allocation5 + $0x1f4] sm:$0xf]
    %v501 = vld [vmem:[#allocation5 + $0x1f8] sm:$0xf]
    %v502 = vld [vmem:[#allocation5 + $0x1fc] sm:$0xf]
    %v503 = vld [vmem:[#allocation5 + $0x200] sm:$0xf]
    %v504 = vld [vmem:[#allocation5 + $0x204] sm:$0xf]
    %v505 = vld [vmem:[#allocation5 + $0x208] sm:$0xf]
    %v506 = vld [vmem:[#allocation5 + $0x20c] sm:$0xf]
    %v507 = vld [vmem:[#allocation5 + $0x210] sm:$0xf]
    %v508 = vld [vmem:[#allocation5 + $0x214] sm:$0xf]
    %v509 = vld [vmem:[#allocation5 + $0x218] sm:$0xf]
    %v510 = vld [vmem:[#allocation5 + $0x21c] sm:$0xf]
    %v511 = vld [vmem:[#allocation5 + $0x220] sm:$0xf]
    %v512 = vld [vmem:[#allocation5 + $0x224] sm:$0xf]
    %v513 = vld [vmem:[#allocation5 + $0x228] sm:$0xf]
    %v514 = vld [vmem:[#allocation5 + $0x22c] sm:$0xf]
    %v515 = vld [vmem:[#allocation5 + $0x230] sm:$0xf]
    %v516 = vld [vmem:[#allocation5 + $0x234] sm:$0xf]
    %v517 = vld [vmem:[#allocation5 + $0x238] sm:$0xf]
    %v518 = vld [vmem:[#allocation5 + $0x23c] sm:$0xf]
    %v519 = vld [vmem:[#allocation5 + $0x240] sm:$0xf]
    %v520 = vld [vmem:[#allocation5 + $0x244] sm:$0xf]
    %v521 = vld [vmem:[#allocation5 + $0x248] sm:$0xf]
    %v522 = vld [vmem:[#allocation5 + $0x24c] sm:$0xf]
    %v523 = vld [vmem:[#allocation5 + $0x250] sm:$0xf]
    %v524 = vld [vmem:[#allocation5 + $0x254] sm:$0xf]
    %v525 = vld [vmem:[#allocation5 + $0x258] sm:$0xf]
    %v526 = vld [vmem:[#allocation5 + $0x25c] sm:$0xf]
    %v527 = vld [vmem:[#allocation5 + $0x260] sm:$0xf]
    %v528 = vld [vmem:[#allocation5 + $0x264] sm:$0xf]
    %v529 = vld [vmem:[#allocation5 + $0x268] sm:$0xf]
    %v530 = vld [vmem:[#allocation5 + $0x26c] sm:$0xf]
    %v531 = vld [vmem:[#allocation5 + $0x270] sm:$0xf]
    %v532 = vld [vmem:[#allocation5 + $0x274] sm:$0xf]
    %v533 = vld [vmem:[#allocation5 + $0x278] sm:$0xf]
    %v534 = vld [vmem:[#allocation5 + $0x27c] sm:$0xf]
    %v535 = vld [vmem:[#allocation5 + $0x280] sm:$0xf]
    %v536 = vld [vmem:[#allocation5 + $0x284] sm:$0xf]
    %v537 = vld [vmem:[#allocation5 + $0x288] sm:$0xf]
    %v538 = vld [vmem:[#allocation5 + $0x28c] sm:$0xf]
    %v539 = vld [vmem:[#allocation5 + $0x290] sm:$0xf]
    %v540 = vld [vmem:[#allocation5 + $0x294] sm:$0xf]
    %v541 = vld [vmem:[#allocation5 + $0x298] sm:$0xf]
    %v542 = vld [vmem:[#allocation5 + $0x29c] sm:$0xf]
    %v543 = vld [vmem:[#allocation5 + $0x2a0] sm:$0xf]
    %v544 = vld [vmem:[#allocation5 + $0x2a4] sm:$0xf]
    %v545 = vld [vmem:[#allocation5 + $0x2a8] sm:$0xf]
    %v546 = vld [vmem:[#allocation5 + $0x2ac] sm:$0xf]
    %v547 = vld [vmem:[#allocation5 + $0x2b0] sm:$0xf]
    %v548 = vld [vmem:[#allocation5 + $0x2b4] sm:$0xf]
    %v549 = vld [vmem:[#allocation5 + $0x2b8] sm:$0xf]
    %v550 = vld [vmem:[#allocation5 + $0x2bc] sm:$0xf]
    %v551 = vld [vmem:[#allocation5 + $0x2c0] sm:$0xf]
    %v552 = vld [vmem:[#allocation5 + $0x2c4] sm:$0xf]
    %v553 = vld [vmem:[#allocation5 + $0x2c8] sm:$0xf]
    %v554 = vld [vmem:[#allocation5 + $0x2cc] sm:$0xf]
    %v555 = vld [vmem:[#allocation5 + $0x2d0] sm:$0xf]
    %v556 = vld [vmem:[#allocation5 + $0x2d4] sm:$0xf]
    %v557 = vld [vmem:[#allocation5 + $0x2d8] sm:$0xf]
    %v558 = vld [vmem:[#allocation5 + $0x2dc] sm:$0xf]
    %v559 = vld [vmem:[#allocation5 + $0x2e0] sm:$0xf]
    %v560 = vld [vmem:[#allocation5 + $0x2e4] sm:$0xf]
    %v561 = vld [vmem:[#allocation5 + $0x2e8] sm:$0xf]
    %v562 = vld [vmem:[#allocation5 + $0x2ec] sm:$0xf]
    %v563 = vld [vmem:[#allocation5 + $0x2f0] sm:$0xf]
    %v564 = vld [vmem:[#allocation5 + $0x2f4] sm:$0xf]
    %v565 = vld [vmem:[#allocation5 + $0x2f8] sm:$0xf]
    %v566 = vld [vmem:[#allocation5 + $0x2fc] sm:$0xf]
    %v567 = vld [vmem:[#allocation5 + $0x300] sm:$0xf]
    %v568 = vld [vmem:[#allocation5 + $0x304] sm:$0xf]
    %v569 = vld [vmem:[#allocation5 + $0x308] sm:$0xf]
    %v570 = vld [vmem:[#allocation5 + $0x30c] sm:$0xf]
    %v571 = vld [vmem:[#allocation5 + $0x310] sm:$0xf]
    %v572 = vld [vmem:[#allocation5 + $0x314] sm:$0xf]
    %v573 = vld [vmem:[#allocation5 + $0x318] sm:$0xf]
    %v574 = vld [vmem:[#allocation5 + $0x31c] sm:$0xf]
    %v575 = vld [vmem:[#allocation5 + $0x320] sm:$0xf]
    %v576 = vld [vmem:[#allocation5 + $0x324] sm:$0xf]
    %v577 = vld [vmem:[#allocation5 + $0x328] sm:$0xf]
    %v578 = vld [vmem:[#allocation5 + $0x32c] sm:$0xf]
    %v579 = vld [vmem:[#allocation5 + $0x330] sm:$0xf]
    %v580 = vld [vmem:[#allocation5 + $0x334] sm:$0xf]
    %v581 = vld [vmem:[#allocation5 + $0x338] sm:$0xf]
    %v582 = vld [vmem:[#allocation5 + $0x33c] sm:$0xf]
    %v583 = vld [vmem:[#allocation5 + $0x340] sm:$0xf]
    %v584 = vld [vmem:[#allocation5 + $0x344] sm:$0xf]
    %v585 = vld [vmem:[#allocation5 + $0x348] sm:$0xf]
    %v586 = vld [vmem:[#allocation5 + $0x34c] sm:$0xf]
    %v587 = vld [vmem:[#allocation5 + $0x350] sm:$0xf]
    %v588 = vld [vmem:[#allocation5 + $0x354] sm:$0xf]
    %v589 = vld [vmem:[#allocation5 + $0x358] sm:$0xf]
    %v590 = vld [vmem:[#allocation5 + $0x35c] sm:$0xf]
    %v591 = vld [vmem:[#allocation5 + $0x360] sm:$0xf]
    %v592 = vld [vmem:[#allocation5 + $0x364] sm:$0xf]
    %v593 = vld [vmem:[#allocation5 + $0x368] sm:$0xf]
    %v594 = vld [vmem:[#allocation5 + $0x36c] sm:$0xf]
    %v595 = vld [vmem:[#allocation5 + $0x370] sm:$0xf]
    %v596 = vld [vmem:[#allocation5 + $0x374] sm:$0xf]
    %v597 = vld [vmem:[#allocation5 + $0x378] sm:$0xf]
    %v598 = vld [vmem:[#allocation5 + $0x37c] sm:$0xf]
    %v599 = vld [vmem:[#allocation5 + $0x380] sm:$0xf]
    %v600 = vld [vmem:[#allocation5 + $0x384] sm:$0xf]
    %v601 = vld [vmem:[#allocation5 + $0x388] sm:$0xf]
    %v602 = vld [vmem:[#allocation5 + $0x38c] sm:$0xf]
    %v603 = vld [vmem:[#allocation5 + $0x390] sm:$0xf]
    %v604 = vld [vmem:[#allocation5 + $0x394] sm:$0xf]
    %v605 = vld [vmem:[#allocation5 + $0x398] sm:$0xf]
    %v606 = vld [vmem:[#allocation5 + $0x39c] sm:$0xf]
    %v607 = vld [vmem:[#allocation5 + $0x3a0] sm:$0xf]
    %v608 = vld [vmem:[#allocation5 + $0x3a4] sm:$0xf]
    %v609 = vld [vmem:[#allocation5 + $0x3a8] sm:$0xf]
    %v610 = vld [vmem:[#allocation5 + $0x3ac] sm:$0xf]
    %v611 = vld [vmem:[#allocation5 + $0x3b0] sm:$0xf]
    %v612 = vld [vmem:[#allocation5 + $0x3b4] sm:$0xf]
    %v613 = vld [vmem:[#allocation5 + $0x3b8] sm:$0xf]
    %v614 = vld [vmem:[#allocation5 + $0x3bc] sm:$0xf]
    %v615 = vld [vmem:[#allocation5 + $0x3c0] sm:$0xf]
    %v616 = vld [vmem:[#allocation5 + $0x3c4] sm:$0xf]
    %v617 = vld [vmem:[#allocation5 + $0x3c8] sm:$0xf]
    %v618 = vld [vmem:[#allocation5 + $0x3cc] sm:$0xf]
    %v619 = vld [vmem:[#allocation5 + $0x3d0] sm:$0xf]
    %v620 = vld [vmem:[#allocation5 + $0x3d4] sm:$0xf]
    %v621 = vld [vmem:[#allocation5 + $0x3d8] sm:$0xf]
    %v622 = vld [vmem:[#allocation5 + $0x3dc] sm:$0xf]
    %v623 = vld [vmem:[#allocation5 + $0x3e0] sm:$0xf]
    %v624 = vld [vmem:[#allocation5 + $0x3e4] sm:$0xf]
    %v625 = vld [vmem:[#allocation5 + $0x3e8] sm:$0xf]
    %v626 = vld [vmem:[#allocation5 + $0x3ec] sm:$0xf]
    %v627 = vld [vmem:[#allocation5 + $0x3f0] sm:$0xf]
    %v628 = vld [vmem:[#allocation5 + $0x3f4] sm:$0xf]
    %v629 = vld [vmem:[#allocation5 + $0x3f8] sm:$0xf]
    %v630 = vld [vmem:[#allocation5 + $0x3fc] sm:$0xf]
    %v631 = vld [vmem:[#allocation5 + $0x400] sm:$0xf]
    %v632 = vld [vmem:[#allocation5 + $0x404] sm:$0xf]
    %v633 = vld [vmem:[#allocation5 + $0x408] sm:$0xf]
    %v634 = vld [vmem:[#allocation5 + $0x40c] sm:$0xf]
    %v635 = vld [vmem:[#allocation5 + $0x410] sm:$0xf]
    %v636 = vld [vmem:[#allocation5 + $0x414] sm:$0xf]
    %v637 = vld [vmem:[#allocation5 + $0x418] sm:$0xf]
    %v638 = vld [vmem:[#allocation5 + $0x41c] sm:$0xf]
    %v639 = vld [vmem:[#allocation5 + $0x420] sm:$0xf]
    %v640 = vld [vmem:[#allocation5 + $0x424] sm:$0xf]
    %v641 = vld [vmem:[#allocation5 + $0x428] sm:$0xf]
    %v642 = vld [vmem:[#allocation5 + $0x42c] sm:$0xf]
    %v643 = vld [vmem:[#allocation5 + $0x430] sm:$0xf]
    %v644 = vld [vmem:[#allocation5 + $0x434] sm:$0xf]
    %v645 = vld [vmem:[#allocation5 + $0x438] sm:$0xf]
    %v646 = vld [vmem:[#allocation5 + $0x43c] sm:$0xf]
    %v647 = vld [vmem:[#allocation5 + $0x440] sm:$0xf]
    %v648 = vld [vmem:[#allocation5 + $0x444] sm:$0xf]
    %v649 = vld [vmem:[#allocation5 + $0x448] sm:$0xf]
    %v650 = vld [vmem:[#allocation5 + $0x44c] sm:$0xf]
    %v651 = vld [vmem:[#allocation5 + $0x450] sm:$0xf]
    %v652 = vld [vmem:[#allocation5 + $0x454] sm:$0xf]
    %v653 = vld [vmem:[#allocation5 + $0x458] sm:$0xf]
    %v654 = vld [vmem:[#allocation5 + $0x45c] sm:$0xf]
    %v655 = vld [vmem:[#allocation5 + $0x460] sm:$0xf]
    %v656 = vld [vmem:[#allocation5 + $0x464] sm:$0xf]
    %v657 = vld [vmem:[#allocation5 + $0x468] sm:$0xf]
    %v658 = vld [vmem:[#allocation5 + $0x46c] sm:$0xf]
    %v659 = vld [vmem:[#allocation5 + $0x470] sm:$0xf]
    %v660 = vld [vmem:[#allocation5 + $0x474] sm:$0xf]
    %v661 = vld [vmem:[#allocation5 + $0x478] sm:$0xf]
    %v662 = vld [vmem:[#allocation5 + $0x47c] sm:$0xf]
    %v663 = vld [vmem:[#allocation5 + $0x480] sm:$0xf]
    %v664 = vld [vmem:[#allocation5 + $0x484] sm:$0xf]
    %v665 = vld [vmem:[#allocation5 + $0x488] sm:$0xf]
    %v666 = vld [vmem:[#allocation5 + $0x48c] sm:$0xf]
    %v667 = vld [vmem:[#allocation5 + $0x490] sm:$0xf]
    %v668 = vld [vmem:[#allocation5 + $0x494] sm:$0xf]
    %v669 = vld [vmem:[#allocation5 + $0x498] sm:$0xf]
    %v670 = vld [vmem:[#allocation5 + $0x49c] sm:$0xf]
    %v671 = vld [vmem:[#allocation5 + $0x4a0] sm:$0xf]
    %v672 = vld [vmem:[#allocation5 + $0x4a4] sm:$0xf]
    %v673 = vld [vmem:[#allocation5 + $0x4a8] sm:$0xf]
    %v674 = vld [vmem:[#allocation5 + $0x4ac] sm:$0xf]
    %v675 = vld [vmem:[#allocation5 + $0x4b0] sm:$0xf]
    %v676 = vld [vmem:[#allocation5 + $0x4b4] sm:$0xf]
    %v677 = vld [vmem:[#allocation5 + $0x4b8] sm:$0xf]
    %v678 = vld [vmem:[#allocation5 + $0x4bc] sm:$0xf]
    %v679 = vld [vmem:[#allocation5 + $0x4c0] sm:$0xf]
    %v680 = vld [vmem:[#allocation5 + $0x4c4] sm:$0xf]
    %v681 = vld [vmem:[#allocation5 + $0x4c8] sm:$0xf]
    %v682 = vld [vmem:[#allocation5 + $0x4cc] sm:$0xf]
    %v683 = vld [vmem:[#allocation5 + $0x4d0] sm:$0xf]
    %v684 = vld [vmem:[#allocation5 + $0x4d4] sm:$0xf]
    %v685 = vld [vmem:[#allocation5 + $0x4d8] sm:$0xf]
    %v686 = vld [vmem:[#allocation5 + $0x4dc] sm:$0xf]
    %v687 = vld [vmem:[#allocation5 + $0x4e0] sm:$0xf]
    %v688 = vld [vmem:[#allocation5 + $0x4e4] sm:$0xf]
    %v689 = vld [vmem:[#allocation5 + $0x4e8] sm:$0xf]
    %v690 = vld [vmem:[#allocation5 + $0x4ec] sm:$0xf]
    %v691 = vld [vmem:[#allocation5 + $0x4f0] sm:$0xf]
    %v692 = vld [vmem:[#allocation5 + $0x4f4] sm:$0xf]
    %v693 = vld [vmem:[#allocation5 + $0x4f8] sm:$0xf]
    %v694 = vld [vmem:[#allocation5 + $0x4fc] sm:$0xf]
    %v695 = vld [vmem:[#allocation5 + $0x500] sm:$0xf]
    %v696 = vld [vmem:[#allocation5 + $0x504] sm:$0xf]
    %v697 = vld [vmem:[#allocation5 + $0x508] sm:$0xf]
    %v698 = vld [vmem:[#allocation5 + $0x50c] sm:$0xf]
    %v699 = vld [vmem:[#allocation5 + $0x510] sm:$0xf]
    %v700 = vld [vmem:[#allocation5 + $0x514] sm:$0xf]
    %v701 = vld [vmem:[#allocation5 + $0x518] sm:$0xf]
    %v702 = vld [vmem:[#allocation5 + $0x51c] sm:$0xf]
    %v703 = vld [vmem:[#allocation5 + $0x520] sm:$0xf]
    %v704 = vld [vmem:[#allocation5 + $0x524] sm:$0xf]
    %v705 = vld [vmem:[#allocation5 + $0x528] sm:$0xf]
    %v706 = vld [vmem:[#allocation5 + $0x52c] sm:$0xf]
    %v707 = vld [vmem:[#allocation5 + $0x530] sm:$0xf]
    %v708 = vld [vmem:[#allocation5 + $0x534] sm:$0xf]
    %v709 = vld [vmem:[#allocation5 + $0x538] sm:$0xf]
    %v710 = vld [vmem:[#allocation5 + $0x53c] sm:$0xf]
    %v711 = vld [vmem:[#allocation5 + $0x540] sm:$0xf]
    %v712 = vld [vmem:[#allocation5 + $0x544] sm:$0xf]
    %v713 = vld [vmem:[#allocation5 + $0x548] sm:$0xf]
    %v714 = vld [vmem:[#allocation5 + $0x54c] sm:$0xf]
    %v715 = vld [vmem:[#allocation5 + $0x550] sm:$0xf]
    %v716 = vld [vmem:[#allocation5 + $0x554] sm:$0xf]
    %v717 = vld [vmem:[#allocation5 + $0x558] sm:$0xf]
    %v718 = vld [vmem:[#allocation5 + $0x55c] sm:$0xf]
    %v719 = vld [vmem:[#allocation5 + $0x560] sm:$0xf]
    %v720 = vld [vmem:[#allocation5 + $0x564] sm:$0xf]
    %v721 = vld [vmem:[#allocation5 + $0x568] sm:$0xf]
    %v722 = vld [vmem:[#allocation5 + $0x56c] sm:$0xf]
    %v723 = vld [vmem:[#allocation5 + $0x570] sm:$0xf]
    %v724 = vld [vmem:[#allocation5 + $0x574] sm:$0xf]
    %v725 = vld [vmem:[#allocation5 + $0x578] sm:$0xf]
    %v726 = vld [vmem:[#allocation5 + $0x57c] sm:$0xf]
    %v727 = vld [vmem:[#allocation5 + $0x580] sm:$0xf]
    %v728 = vld [vmem:[#allocation5 + $0x584] sm:$0xf]
    %v729 = vld [vmem:[#allocation5 + $0x588] sm:$0xf]
    %v730 = vld [vmem:[#allocation5 + $0x58c] sm:$0xf]
    %v731 = vld [vmem:[#allocation5 + $0x590] sm:$0xf]
    %v732 = vld [vmem:[#allocation5 + $0x594] sm:$0xf]
    %v733 = vld [vmem:[#allocation5 + $0x598] sm:$0xf]
    %v734 = vld [vmem:[#allocation5 + $0x59c] sm:$0xf]
    %v735 = vld [vmem:[#allocation5 + $0x5a0] sm:$0xf]
    %v736 = vld [vmem:[#allocation5 + $0x5a4] sm:$0xf]
    %v737 = vld [vmem:[#allocation5 + $0x5a8] sm:$0xf]
    %v738 = vld [vmem:[#allocation5 + $0x5ac] sm:$0xf]
    %v739 = vld [vmem:[#allocation5 + $0x5b0] sm:$0xf]
    %v740 = vld [vmem:[#allocation5 + $0x5b4] sm:$0xf]
    %v741 = vld [vmem:[#allocation5 + $0x5b8] sm:$0xf]
    %v742 = vld [vmem:[#allocation5 + $0x5bc] sm:$0xf]
    %v743 = vld [vmem:[#allocation5 + $0x5c0] sm:$0xf]
    %v744 = vld [vmem:[#allocation5 + $0x5c4] sm:$0xf]
    %v745 = vld [vmem:[#allocation5 + $0x5c8] sm:$0xf]
    %v746 = vld [vmem:[#allocation5 + $0x5cc] sm:$0xf]
    %v747 = vld [vmem:[#allocation5 + $0x5d0] sm:$0xf]
    %v748 = vld [vmem:[#allocation5 + $0x5d4] sm:$0xf]
    %v749 = vld [vmem:[#allocation5 + $0x5d8] sm:$0xf]
    %v750 = vld [vmem:[#allocation5 + $0x5dc] sm:$0xf]
    %v751 = vld [vmem:[#allocation5 + $0x5e0] sm:$0xf]
    %v752 = vld [vmem:[#allocation5 + $0x5e4] sm:$0xf]
    %v753 = vld [vmem:[#allocation5 + $0x5e8] sm:$0xf]
    %v754 = vld [vmem:[#allocation5 + $0x5ec] sm:$0xf]
    %v755 = vld [vmem:[#allocation5 + $0x5f0] sm:$0xf]
    %v756 = vld [vmem:[#allocation5 + $0x5f4] sm:$0xf]
    %v757 = vld [vmem:[#allocation5 + $0x5f8] sm:$0xf]
    %v758 = vld [vmem:[#allocation5 + $0x5fc] sm:$0xf]
    %v759 = vld [vmem:[%s2] sm:$0x1]
    %v761 = vlaneseq
    %v762 = vshrl.u32 %v761, 7
    %v763 = vsub.s32 0, %v762
    %v764 = vrot.slane %v759, %v763
    %v1150 = vunpack.c.l.b16 %v375
    %v1151 = vunpack.c.l.b16 %v376
    %v1152 = vunpack.c.l.b16 %v377
    %v1153 = vunpack.c.l.b16 %v378
    %v1154 = vunpack.c.l.b16 %v379
    %v1155 = vunpack.c.l.b16 %v380
    %v1156 = vunpack.c.l.b16 %v381
    %v1157 = vunpack.c.l.b16 %v382
    %v1158 = vunpack.c.l.b16 %v383
    %v1159 = vunpack.c.l.b16 %v384
    %v1160 = vunpack.c.l.b16 %v385
    %v1161 = vunpack.c.l.b16 %v386
    %v1162 = vunpack.c.l.b16 %v387
    %v1163 = vunpack.c.l.b16 %v388
    %v1164 = vunpack.c.l.b16 %v389
    %v1165 = vunpack.c.l.b16 %v390
    %v1166 = vunpack.c.l.b16 %v391
    %v1167 = vunpack.c.l.b16 %v392
    %v1168 = vunpack.c.l.b16 %v393
    %v1169 = vunpack.c.l.b16 %v394
    %v1170 = vunpack.c.l.b16 %v395
    %v1171 = vunpack.c.l.b16 %v396
    %v1172 = vunpack.c.l.b16 %v397
    %v1173 = vunpack.c.l.b16 %v398
    %v1174 = vunpack.c.l.b16 %v399
    %v1175 = vunpack.c.l.b16 %v400
    %v1176 = vunpack.c.l.b16 %v401
    %v1177 = vunpack.c.l.b16 %v402
    %v1178 = vunpack.c.l.b16 %v403
    %v1179 = vunpack.c.l.b16 %v404
    %v1180 = vunpack.c.l.b16 %v405
    %v1181 = vunpack.c.l.b16 %v406
    %v1182 = vunpack.c.l.b16 %v407
    %v1183 = vunpack.c.l.b16 %v408
    %v1184 = vunpack.c.l.b16 %v409
    %v1185 = vunpack.c.l.b16 %v410
    %v1186 = vunpack.c.l.b16 %v411
    %v1187 = vunpack.c.l.b16 %v412
    %v1188 = vunpack.c.l.b16 %v413
    %v1189 = vunpack.c.l.b16 %v414
    %v1190 = vunpack.c.l.b16 %v415
    %v1191 = vunpack.c.l.b16 %v416
    %v1192 = vunpack.c.l.b16 %v417
    %v1193 = vunpack.c.l.b16 %v418
    %v1194 = vunpack.c.l.b16 %v419
    %v1195 = vunpack.c.l.b16 %v420
    %v1196 = vunpack.c.l.b16 %v421
    %v1197 = vunpack.c.l.b16 %v422
    %v1198 = vunpack.c.l.b16 %v423
    %v1199 = vunpack.c.l.b16 %v424
    %v1200 = vunpack.c.l.b16 %v425
    %v1201 = vunpack.c.l.b16 %v426
    %v1202 = vunpack.c.l.b16 %v427
    %v1203 = vunpack.c.l.b16 %v428
    %v1204 = vunpack.c.l.b16 %v429
    %v1205 = vunpack.c.l.b16 %v430
    %v1206 = vunpack.c.l.b16 %v431
    %v1207 = vunpack.c.l.b16 %v432
    %v1208 = vunpack.c.l.b16 %v433
    %v1209 = vunpack.c.l.b16 %v434
    %v1210 = vunpack.c.l.b16 %v435
    %v1211 = vunpack.c.l.b16 %v436
    %v1212 = vunpack.c.l.b16 %v437
    %v1213 = vunpack.c.l.b16 %v438
    %v1214 = vunpack.c.l.b16 %v439
    %v1215 = vunpack.c.l.b16 %v440
    %v1216 = vunpack.c.l.b16 %v441
    %v1217 = vunpack.c.l.b16 %v442
    %v1218 = vunpack.c.l.b16 %v443
    %v1219 = vunpack.c.l.b16 %v444
    %v1220 = vunpack.c.l.b16 %v445
    %v1221 = vunpack.c.l.b16 %v446
    %v1222 = vunpack.c.l.b16 %v447
    %v1223 = vunpack.c.l.b16 %v448
    %v1224 = vunpack.c.l.b16 %v449
    %v1225 = vunpack.c.l.b16 %v450
    %v1226 = vunpack.c.l.b16 %v451
    %v1227 = vunpack.c.l.b16 %v452
    %v1228 = vunpack.c.l.b16 %v453
    %v1229 = vunpack.c.l.b16 %v454
    %v1230 = vunpack.c.l.b16 %v455
    %v1231 = vunpack.c.l.b16 %v456
    %v1232 = vunpack.c.l.b16 %v457
    %v1233 = vunpack.c.l.b16 %v458
    %v1234 = vunpack.c.l.b16 %v459
    %v1235 = vunpack.c.l.b16 %v460
    %v1236 = vunpack.c.l.b16 %v461
    %v1237 = vunpack.c.l.b16 %v462
    %v1238 = vunpack.c.l.b16 %v463
    %v1239 = vunpack.c.l.b16 %v464
    %v1240 = vunpack.c.l.b16 %v465
    %v1241 = vunpack.c.l.b16 %v466
    %v1242 = vunpack.c.l.b16 %v467
    %v1243 = vunpack.c.l.b16 %v468
    %v1244 = vunpack.c.l.b16 %v469
    %v1245 = vunpack.c.l.b16 %v470
    %v1246 = vunpack.c.l.b16 %v471
    %v1247 = vunpack.c.l.b16 %v472
    %v1248 = vunpack.c.l.b16 %v473
    %v1249 = vunpack.c.l.b16 %v474
    %v1250 = vunpack.c.l.b16 %v475
    %v1251 = vunpack.c.l.b16 %v476
    %v1252 = vunpack.c.l.b16 %v477
    %v1253 = vunpack.c.l.b16 %v478
    %v1254 = vunpack.c.l.b16 %v479
    %v1255 = vunpack.c.l.b16 %v480
    %v1256 = vunpack.c.l.b16 %v481
    %v1257 = vunpack.c.l.b16 %v482
    %v1258 = vunpack.c.l.b16 %v483
    %v1259 = vunpack.c.l.b16 %v484
    %v1260 = vunpack.c.l.b16 %v485
    %v1261 = vunpack.c.l.b16 %v486
    %v1262 = vunpack.c.l.b16 %v487
    %v1263 = vunpack.c.l.b16 %v488
    %v1264 = vunpack.c.l.b16 %v489
    %v1265 = vunpack.c.l.b16 %v490
    %v1266 = vunpack.c.l.b16 %v491
    %v1267 = vunpack.c.l.b16 %v492
    %v1268 = vunpack.c.l.b16 %v493
    %v1269 = vunpack.c.l.b16 %v494
    %v1270 = vunpack.c.l.b16 %v495
    %v1271 = vunpack.c.l.b16 %v496
    %v1272 = vunpack.c.l.b16 %v497
    %v1273 = vunpack.c.l.b16 %v498
    %v1274 = vunpack.c.l.b16 %v499
    %v1275 = vunpack.c.l.b16 %v500
    %v1276 = vunpack.c.l.b16 %v501
    %v1277 = vunpack.c.l.b16 %v502
    %v1278 = vunpack.c.l.b16 %v503
    %v1279 = vunpack.c.l.b16 %v504
    %v1280 = vunpack.c.l.b16 %v505
    %v1281 = vunpack.c.l.b16 %v506
    %v1282 = vunpack.c.l.b16 %v507
    %v1283 = vunpack.c.l.b16 %v508
    %v1284 = vunpack.c.l.b16 %v509
    %v1285 = vunpack.c.l.b16 %v510
    %v1286 = vunpack.c.l.b16 %v511
    %v1287 = vunpack.c.l.b16 %v512
    %v1288 = vunpack.c.l.b16 %v513
    %v1289 = vunpack.c.l.b16 %v514
    %v1290 = vunpack.c.l.b16 %v515
    %v1291 = vunpack.c.l.b16 %v516
    %v1292 = vunpack.c.l.b16 %v517
    %v1293 = vunpack.c.l.b16 %v518
    %v1294 = vunpack.c.l.b16 %v519
    %v1295 = vunpack.c.l.b16 %v520
    %v1296 = vunpack.c.l.b16 %v521
    %v1297 = vunpack.c.l.b16 %v522
    %v1298 = vunpack.c.l.b16 %v523
    %v1299 = vunpack.c.l.b16 %v524
    %v1300 = vunpack.c.l.b16 %v525
    %v1301 = vunpack.c.l.b16 %v526
    %v1302 = vunpack.c.l.b16 %v527
    %v1303 = vunpack.c.l.b16 %v528
    %v1304 = vunpack.c.l.b16 %v529
    %v1305 = vunpack.c.l.b16 %v530
    %v1306 = vunpack.c.l.b16 %v531
    %v1307 = vunpack.c.l.b16 %v532
    %v1308 = vunpack.c.l.b16 %v533
    %v1309 = vunpack.c.l.b16 %v534
    %v1310 = vunpack.c.l.b16 %v535
    %v1311 = vunpack.c.l.b16 %v536
    %v1312 = vunpack.c.l.b16 %v537
    %v1313 = vunpack.c.l.b16 %v538
    %v1314 = vunpack.c.l.b16 %v539
    %v1315 = vunpack.c.l.b16 %v540
    %v1316 = vunpack.c.l.b16 %v541
    %v1317 = vunpack.c.l.b16 %v542
    %v1318 = vunpack.c.l.b16 %v543
    %v1319 = vunpack.c.l.b16 %v544
    %v1320 = vunpack.c.l.b16 %v545
    %v1321 = vunpack.c.l.b16 %v546
    %v1322 = vunpack.c.l.b16 %v547
    %v1323 = vunpack.c.l.b16 %v548
    %v1324 = vunpack.c.l.b16 %v549
    %v1325 = vunpack.c.l.b16 %v550
    %v1326 = vunpack.c.l.b16 %v551
    %v1327 = vunpack.c.l.b16 %v552
    %v1328 = vunpack.c.l.b16 %v553
    %v1329 = vunpack.c.l.b16 %v554
    %v1330 = vunpack.c.l.b16 %v555
    %v1331 = vunpack.c.l.b16 %v556
    %v1332 = vunpack.c.l.b16 %v557
    %v1333 = vunpack.c.l.b16 %v558
    %v1334 = vunpack.c.l.b16 %v559
    %v1335 = vunpack.c.l.b16 %v560
    %v1336 = vunpack.c.l.b16 %v561
    %v1337 = vunpack.c.l.b16 %v562
    %v1338 = vunpack.c.l.b16 %v563
    %v1339 = vunpack.c.l.b16 %v564
    %v1340 = vunpack.c.l.b16 %v565
    %v1341 = vunpack.c.l.b16 %v566
    %v1342 = vunpack.c.l.b16 %v567
    %v1343 = vunpack.c.l.b16 %v568
    %v1344 = vunpack.c.l.b16 %v569
    %v1345 = vunpack.c.l.b16 %v570
    %v1346 = vunpack.c.l.b16 %v571
    %v1347 = vunpack.c.l.b16 %v572
    %v1348 = vunpack.c.l.b16 %v573
    %v1349 = vunpack.c.l.b16 %v574
    %v1350 = vunpack.c.l.b16 %v575
    %v1351 = vunpack.c.l.b16 %v576
    %v1352 = vunpack.c.l.b16 %v577
    %v1353 = vunpack.c.l.b16 %v578
    %v1354 = vunpack.c.l.b16 %v579
    %v1355 = vunpack.c.l.b16 %v580
    %v1356 = vunpack.c.l.b16 %v581
    %v1357 = vunpack.c.l.b16 %v582
    %v1358 = vunpack.c.l.b16 %v583
    %v1359 = vunpack.c.l.b16 %v584
    %v1360 = vunpack.c.l.b16 %v585
    %v1361 = vunpack.c.l.b16 %v586
    %v1362 = vunpack.c.l.b16 %v587
    %v1363 = vunpack.c.l.b16 %v588
    %v1364 = vunpack.c.l.b16 %v589
    %v1365 = vunpack.c.l.b16 %v590
    %v1366 = vunpack.c.l.b16 %v591
    %v1367 = vunpack.c.l.b16 %v592
    %v1368 = vunpack.c.l.b16 %v593
    %v1369 = vunpack.c.l.b16 %v594
    %v1370 = vunpack.c.l.b16 %v595
    %v1371 = vunpack.c.l.b16 %v596
    %v1372 = vunpack.c.l.b16 %v597
    %v1373 = vunpack.c.l.b16 %v598
    %v1374 = vunpack.c.l.b16 %v599
    %v1375 = vunpack.c.l.b16 %v600
    %v1376 = vunpack.c.l.b16 %v601
    %v1377 = vunpack.c.l.b16 %v602
    %v1378 = vunpack.c.l.b16 %v603
    %v1379 = vunpack.c.l.b16 %v604
    %v1380 = vunpack.c.l.b16 %v605
    %v1381 = vunpack.c.l.b16 %v606
    %v1382 = vunpack.c.l.b16 %v607
    %v1383 = vunpack.c.l.b16 %v608
    %v1384 = vunpack.c.l.b16 %v609
    %v1385 = vunpack.c.l.b16 %v610
    %v1386 = vunpack.c.l.b16 %v611
    %v1387 = vunpack.c.l.b16 %v612
    %v1388 = vunpack.c.l.b16 %v613
    %v1389 = vunpack.c.l.b16 %v614
    %v1390 = vunpack.c.l.b16 %v615
    %v1391 = vunpack.c.l.b16 %v616
    %v1392 = vunpack.c.l.b16 %v617
    %v1393 = vunpack.c.l.b16 %v618
    %v1394 = vunpack.c.l.b16 %v619
    %v1395 = vunpack.c.l.b16 %v620
    %v1396 = vunpack.c.l.b16 %v621
    %v1397 = vunpack.c.l.b16 %v622
    %v1398 = vunpack.c.l.b16 %v623
    %v1399 = vunpack.c.l.b16 %v624
    %v1400 = vunpack.c.l.b16 %v625
    %v1401 = vunpack.c.l.b16 %v626
    %v1402 = vunpack.c.l.b16 %v627
    %v1403 = vunpack.c.l.b16 %v628
    %v1404 = vunpack.c.l.b16 %v629
    %v1405 = vunpack.c.l.b16 %v630
    %v1406 = vunpack.c.l.b16 %v631
    %v1407 = vunpack.c.l.b16 %v632
    %v1408 = vunpack.c.l.b16 %v633
    %v1409 = vunpack.c.l.b16 %v634
    %v1410 = vunpack.c.l.b16 %v635
    %v1411 = vunpack.c.l.b16 %v636
    %v1412 = vunpack.c.l.b16 %v637
    %v1413 = vunpack.c.l.b16 %v638
    %v1414 = vunpack.c.l.b16 %v639
    %v1415 = vunpack.c.l.b16 %v640
    %v1416 = vunpack.c.l.b16 %v641
    %v1417 = vunpack.c.l.b16 %v642
    %v1418 = vunpack.c.l.b16 %v643
    %v1419 = vunpack.c.l.b16 %v644
    %v1420 = vunpack.c.l.b16 %v645
    %v1421 = vunpack.c.l.b16 %v646
    %v1422 = vunpack.c.l.b16 %v647
    %v1423 = vunpack.c.l.b16 %v648
    %v1424 = vunpack.c.l.b16 %v649
    %v1425 = vunpack.c.l.b16 %v650
    %v1426 = vunpack.c.l.b16 %v651
    %v1427 = vunpack.c.l.b16 %v652
    %v1428 = vunpack.c.l.b16 %v653
    %v1429 = vunpack.c.l.b16 %v654
    %v1430 = vunpack.c.l.b16 %v655
    %v1431 = vunpack.c.l.b16 %v656
    %v1432 = vunpack.c.l.b16 %v657
    %v1433 = vunpack.c.l.b16 %v658
    %v1434 = vunpack.c.l.b16 %v659
    %v1435 = vunpack.c.l.b16 %v660
    %v1436 = vunpack.c.l.b16 %v661
    %v1437 = vunpack.c.l.b16 %v662
    %v1438 = vunpack.c.l.b16 %v663
    %v1439 = vunpack.c.l.b16 %v664
    %v1440 = vunpack.c.l.b16 %v665
    %v1441 = vunpack.c.l.b16 %v666
    %v1442 = vunpack.c.l.b16 %v667
    %v1443 = vunpack.c.l.b16 %v668
    %v1444 = vunpack.c.l.b16 %v669
    %v1445 = vunpack.c.l.b16 %v670
    %v1446 = vunpack.c.l.b16 %v671
    %v1447 = vunpack.c.l.b16 %v672
    %v1448 = vunpack.c.l.b16 %v673
    %v1449 = vunpack.c.l.b16 %v674
    %v1450 = vunpack.c.l.b16 %v675
    %v1451 = vunpack.c.l.b16 %v676
    %v1452 = vunpack.c.l.b16 %v677
    %v1453 = vunpack.c.l.b16 %v678
    %v1454 = vunpack.c.l.b16 %v679
    %v1455 = vunpack.c.l.b16 %v680
    %v1456 = vunpack.c.l.b16 %v681
    %v1457 = vunpack.c.l.b16 %v682
    %v1458 = vunpack.c.l.b16 %v683
    %v1459 = vunpack.c.l.b16 %v684
    %v1460 = vunpack.c.l.b16 %v685
    %v1461 = vunpack.c.l.b16 %v686
    %v1462 = vunpack.c.l.b16 %v687
    %v1463 = vunpack.c.l.b16 %v688
    %v1464 = vunpack.c.l.b16 %v689
    %v1465 = vunpack.c.l.b16 %v690
    %v1466 = vunpack.c.l.b16 %v691
    %v1467 = vunpack.c.l.b16 %v692
    %v1468 = vunpack.c.l.b16 %v693
    %v1469 = vunpack.c.l.b16 %v694
    %v1470 = vunpack.c.l.b16 %v695
    %v1471 = vunpack.c.l.b16 %v696
    %v1472 = vunpack.c.l.b16 %v697
    %v1473 = vunpack.c.l.b16 %v698
    %v1474 = vunpack.c.l.b16 %v699
    %v1475 = vunpack.c.l.b16 %v700
    %v1476 = vunpack.c.l.b16 %v701
    %v1477 = vunpack.c.l.b16 %v702
    %v1478 = vunpack.c.l.b16 %v703
    %v1479 = vunpack.c.l.b16 %v704
    %v1480 = vunpack.c.l.b16 %v705
    %v1481 = vunpack.c.l.b16 %v706
    %v1482 = vunpack.c.l.b16 %v707
    %v1483 = vunpack.c.l.b16 %v708
    %v1484 = vunpack.c.l.b16 %v709
    %v1485 = vunpack.c.l.b16 %v710
    %v1486 = vunpack.c.l.b16 %v711
    %v1487 = vunpack.c.l.b16 %v712
    %v1488 = vunpack.c.l.b16 %v713
    %v1489 = vunpack.c.l.b16 %v714
    %v1490 = vunpack.c.l.b16 %v715
    %v1491 = vunpack.c.l.b16 %v716
    %v1492 = vunpack.c.l.b16 %v717
    %v1493 = vunpack.c.l.b16 %v718
    %v1494 = vunpack.c.l.b16 %v719
    %v1495 = vunpack.c.l.b16 %v720
    %v1496 = vunpack.c.l.b16 %v721
    %v1497 = vunpack.c.l.b16 %v722
    %v1498 = vunpack.c.l.b16 %v723
    %v1499 = vunpack.c.l.b16 %v724
    %v1500 = vunpack.c.l.b16 %v725
    %v1501 = vunpack.c.l.b16 %v726
    %v1502 = vunpack.c.l.b16 %v727
    %v1503 = vunpack.c.l.b16 %v728
    %v1504 = vunpack.c.l.b16 %v729
    %v1505 = vunpack.c.l.b16 %v730
    %v1506 = vunpack.c.l.b16 %v731
    %v1507 = vunpack.c.l.b16 %v732
    %v1508 = vunpack.c.l.b16 %v733
    %v1509 = vunpack.c.l.b16 %v734
    %v1510 = vunpack.c.l.b16 %v735
    %v1511 = vunpack.c.l.b16 %v736
    %v1512 = vunpack.c.l.b16 %v737
    %v1513 = vunpack.c.l.b16 %v738
    %v1514 = vunpack.c.l.b16 %v739
    %v1515 = vunpack.c.l.b16 %v740
    %v1516 = vunpack.c.l.b16 %v741
    %v1517 = vunpack.c.l.b16 %v742
    %v1518 = vunpack.c.l.b16 %v743
    %v1519 = vunpack.c.l.b16 %v744
    %v1520 = vunpack.c.l.b16 %v745
    %v1521 = vunpack.c.l.b16 %v746
    %v1522 = vunpack.c.l.b16 %v747
    %v1523 = vunpack.c.l.b16 %v748
    %v1524 = vunpack.c.l.b16 %v749
    %v1525 = vunpack.c.l.b16 %v750
    %v1526 = vunpack.c.l.b16 %v751
    %v1527 = vunpack.c.l.b16 %v752
    %v1528 = vunpack.c.l.b16 %v753
    %v1529 = vunpack.c.l.b16 %v754
    %v1530 = vunpack.c.l.b16 %v755
    %v1531 = vunpack.c.l.b16 %v756
    %v1532 = vunpack.c.l.b16 %v757
    %v1533 = vunpack.c.l.b16 %v758
    %v1534 = vpack.c.b16 %v1151, %v1150
    %v1535 = vpack.c.b16 %v1153, %v1152
    %v1536 = vpack.c.b16 %v1155, %v1154
    %v1537 = vpack.c.b16 %v1157, %v1156
    %v1538 = vpack.c.b16 %v1159, %v1158
    %v1539 = vpack.c.b16 %v1161, %v1160
    %v1540 = vpack.c.b16 %v1163, %v1162
    %v1541 = vpack.c.b16 %v1165, %v1164
    %v1542 = vpack.c.b16 %v1167, %v1166
    %v1543 = vpack.c.b16 %v1169, %v1168
    %v1544 = vpack.c.b16 %v1171, %v1170
    %v1545 = vpack.c.b16 %v1173, %v1172
    %v1546 = vpack.c.b16 %v1175, %v1174
    %v1547 = vpack.c.b16 %v1177, %v1176
    %v1548 = vpack.c.b16 %v1179, %v1178
    %v1549 = vpack.c.b16 %v1181, %v1180
    %v1550 = vpack.c.b16 %v1183, %v1182
    %v1551 = vpack.c.b16 %v1185, %v1184
    %v1552 = vpack.c.b16 %v1187, %v1186
    %v1553 = vpack.c.b16 %v1189, %v1188
    %v1554 = vpack.c.b16 %v1191, %v1190
    %v1555 = vpack.c.b16 %v1193, %v1192
    %v1556 = vpack.c.b16 %v1195, %v1194
    %v1557 = vpack.c.b16 %v1197, %v1196
    %v1558 = vpack.c.b16 %v1199, %v1198
    %v1559 = vpack.c.b16 %v1201, %v1200
    %v1560 = vpack.c.b16 %v1203, %v1202
    %v1561 = vpack.c.b16 %v1205, %v1204
    %v1562 = vpack.c.b16 %v1207, %v1206
    %v1563 = vpack.c.b16 %v1209, %v1208
    %v1564 = vpack.c.b16 %v1211, %v1210
    %v1565 = vpack.c.b16 %v1213, %v1212
    %v1566 = vpack.c.b16 %v1215, %v1214
    %v1567 = vpack.c.b16 %v1217, %v1216
    %v1568 = vpack.c.b16 %v1219, %v1218
    %v1569 = vpack.c.b16 %v1221, %v1220
    %v1570 = vpack.c.b16 %v1223, %v1222
    %v1571 = vpack.c.b16 %v1225, %v1224
    %v1572 = vpack.c.b16 %v1227, %v1226
    %v1573 = vpack.c.b16 %v1229, %v1228
    %v1574 = vpack.c.b16 %v1231, %v1230
    %v1575 = vpack.c.b16 %v1233, %v1232
    %v1576 = vpack.c.b16 %v1235, %v1234
    %v1577 = vpack.c.b16 %v1237, %v1236
    %v1578 = vpack.c.b16 %v1239, %v1238
    %v1579 = vpack.c.b16 %v1241, %v1240
    %v1580 = vpack.c.b16 %v1243, %v1242
    %v1581 = vpack.c.b16 %v1245, %v1244
    %v1582 = vpack.c.b16 %v1247, %v1246
    %v1583 = vpack.c.b16 %v1249, %v1248
    %v1584 = vpack.c.b16 %v1251, %v1250
    %v1585 = vpack.c.b16 %v1253, %v1252
    %v1586 = vpack.c.b16 %v1255, %v1254
    %v1587 = vpack.c.b16 %v1257, %v1256
    %v1588 = vpack.c.b16 %v1259, %v1258
    %v1589 = vpack.c.b16 %v1261, %v1260
    %v1590 = vpack.c.b16 %v1263, %v1262
    %v1591 = vpack.c.b16 %v1265, %v1264
    %v1592 = vpack.c.b16 %v1267, %v1266
    %v1593 = vpack.c.b16 %v1269, %v1268
    %v1594 = vpack.c.b16 %v1271, %v1270
    %v1595 = vpack.c.b16 %v1273, %v1272
    %v1596 = vpack.c.b16 %v1275, %v1274
    %v1597 = vpack.c.b16 %v1277, %v1276
    %v1598 = vpack.c.b16 %v1279, %v1278
    %v1599 = vpack.c.b16 %v1281, %v1280
    %v1600 = vpack.c.b16 %v1283, %v1282
    %v1601 = vpack.c.b16 %v1285, %v1284
    %v1602 = vpack.c.b16 %v1287, %v1286
    %v1603 = vpack.c.b16 %v1289, %v1288
    %v1604 = vpack.c.b16 %v1291, %v1290
    %v1605 = vpack.c.b16 %v1293, %v1292
    %v1606 = vpack.c.b16 %v1295, %v1294
    %v1607 = vpack.c.b16 %v1297, %v1296
    %v1608 = vpack.c.b16 %v1299, %v1298
    %v1609 = vpack.c.b16 %v1301, %v1300
    %v1610 = vpack.c.b16 %v1303, %v1302
    %v1611 = vpack.c.b16 %v1305, %v1304
    %v1612 = vpack.c.b16 %v1307, %v1306
    %v1613 = vpack.c.b16 %v1309, %v1308
    %v1614 = vpack.c.b16 %v1311, %v1310
    %v1615 = vpack.c.b16 %v1313, %v1312
    %v1616 = vpack.c.b16 %v1315, %v1314
    %v1617 = vpack.c.b16 %v1317, %v1316
    %v1618 = vpack.c.b16 %v1319, %v1318
    %v1619 = vpack.c.b16 %v1321, %v1320
    %v1620 = vpack.c.b16 %v1323, %v1322
    %v1621 = vpack.c.b16 %v1325, %v1324
    %v1622 = vpack.c.b16 %v1327, %v1326
    %v1623 = vpack.c.b16 %v1329, %v1328
    %v1624 = vpack.c.b16 %v1331, %v1330
    %v1625 = vpack.c.b16 %v1333, %v1332
    %v1626 = vpack.c.b16 %v1335, %v1334
    %v1627 = vpack.c.b16 %v1337, %v1336
    %v1628 = vpack.c.b16 %v1339, %v1338
    %v1629 = vpack.c.b16 %v1341, %v1340
    %v1630 = vpack.c.b16 %v1343, %v1342
    %v1631 = vpack.c.b16 %v1345, %v1344
    %v1632 = vpack.c.b16 %v1347, %v1346
    %v1633 = vpack.c.b16 %v1349, %v1348
    %v1634 = vpack.c.b16 %v1351, %v1350
    %v1635 = vpack.c.b16 %v1353, %v1352
    %v1636 = vpack.c.b16 %v1355, %v1354
    %v1637 = vpack.c.b16 %v1357, %v1356
    %v1638 = vpack.c.b16 %v1359, %v1358
    %v1639 = vpack.c.b16 %v1361, %v1360
    %v1640 = vpack.c.b16 %v1363, %v1362
    %v1641 = vpack.c.b16 %v1365, %v1364
    %v1642 = vpack.c.b16 %v1367, %v1366
    %v1643 = vpack.c.b16 %v1369, %v1368
    %v1644 = vpack.c.b16 %v1371, %v1370
    %v1645 = vpack.c.b16 %v1373, %v1372
    %v1646 = vpack.c.b16 %v1375, %v1374
    %v1647 = vpack.c.b16 %v1377, %v1376
    %v1648 = vpack.c.b16 %v1379, %v1378
    %v1649 = vpack.c.b16 %v1381, %v1380
    %v1650 = vpack.c.b16 %v1383, %v1382
    %v1651 = vpack.c.b16 %v1385, %v1384
    %v1652 = vpack.c.b16 %v1387, %v1386
    %v1653 = vpack.c.b16 %v1389, %v1388
    %v1654 = vpack.c.b16 %v1391, %v1390
    %v1655 = vpack.c.b16 %v1393, %v1392
    %v1656 = vpack.c.b16 %v1395, %v1394
    %v1657 = vpack.c.b16 %v1397, %v1396
    %v1658 = vpack.c.b16 %v1399, %v1398
    %v1659 = vpack.c.b16 %v1401, %v1400
    %v1660 = vpack.c.b16 %v1403, %v1402
    %v1661 = vpack.c.b16 %v1405, %v1404
    %v1662 = vpack.c.b16 %v1407, %v1406
    %v1663 = vpack.c.b16 %v1409, %v1408
    %v1664 = vpack.c.b16 %v1411, %v1410
    %v1665 = vpack.c.b16 %v1413, %v1412
    %v1666 = vpack.c.b16 %v1415, %v1414
    %v1667 = vpack.c.b16 %v1417, %v1416
    %v1668 = vpack.c.b16 %v1419, %v1418
    %v1669 = vpack.c.b16 %v1421, %v1420
    %v1670 = vpack.c.b16 %v1423, %v1422
    %v1671 = vpack.c.b16 %v1425, %v1424
    %v1672 = vpack.c.b16 %v1427, %v1426
    %v1673 = vpack.c.b16 %v1429, %v1428
    %v1674 = vpack.c.b16 %v1431, %v1430
    %v1675 = vpack.c.b16 %v1433, %v1432
    %v1676 = vpack.c.b16 %v1435, %v1434
    %v1677 = vpack.c.b16 %v1437, %v1436
    %v1678 = vpack.c.b16 %v1439, %v1438
    %v1679 = vpack.c.b16 %v1441, %v1440
    %v1680 = vpack.c.b16 %v1443, %v1442
    %v1681 = vpack.c.b16 %v1445, %v1444
    %v1682 = vpack.c.b16 %v1447, %v1446
    %v1683 = vpack.c.b16 %v1449, %v1448
    %v1684 = vpack.c.b16 %v1451, %v1450
    %v1685 = vpack.c.b16 %v1453, %v1452
    %v1686 = vpack.c.b16 %v1455, %v1454
    %v1687 = vpack.c.b16 %v1457, %v1456
    %v1688 = vpack.c.b16 %v1459, %v1458
    %v1689 = vpack.c.b16 %v1461, %v1460
    %v1690 = vpack.c.b16 %v1463, %v1462
    %v1691 = vpack.c.b16 %v1465, %v1464
    %v1692 = vpack.c.b16 %v1467, %v1466
    %v1693 = vpack.c.b16 %v1469, %v1468
    %v1694 = vpack.c.b16 %v1471, %v1470
    %v1695 = vpack.c.b16 %v1473, %v1472
    %v1696 = vpack.c.b16 %v1475, %v1474
    %v1697 = vpack.c.b16 %v1477, %v1476
    %v1698 = vpack.c.b16 %v1479, %v1478
    %v1699 = vpack.c.b16 %v1481, %v1480
    %v1700 = vpack.c.b16 %v1483, %v1482
    %v1701 = vpack.c.b16 %v1485, %v1484
    %v1702 = vpack.c.b16 %v1487, %v1486
    %v1703 = vpack.c.b16 %v1489, %v1488
    %v1704 = vpack.c.b16 %v1491, %v1490
    %v1705 = vpack.c.b16 %v1493, %v1492
    %v1706 = vpack.c.b16 %v1495, %v1494
    %v1707 = vpack.c.b16 %v1497, %v1496
    %v1708 = vpack.c.b16 %v1499, %v1498
    %v1709 = vpack.c.b16 %v1501, %v1500
    %v1710 = vpack.c.b16 %v1503, %v1502
    %v1711 = vpack.c.b16 %v1505, %v1504
    %v1712 = vpack.c.b16 %v1507, %v1506
    %v1713 = vpack.c.b16 %v1509, %v1508
    %v1714 = vpack.c.b16 %v1511, %v1510
    %v1715 = vpack.c.b16 %v1513, %v1512
    %v1716 = vpack.c.b16 %v1515, %v1514
    %v1717 = vpack.c.b16 %v1517, %v1516
    %v1718 = vpack.c.b16 %v1519, %v1518
    %v1719 = vpack.c.b16 %v1521, %v1520
    %v1720 = vpack.c.b16 %v1523, %v1522
    %v1721 = vpack.c.b16 %v1525, %v1524
    %v1722 = vpack.c.b16 %v1527, %v1526
    %v1723 = vpack.c.b16 %v1529, %v1528
    %v1724 = vpack.c.b16 %v1531, %v1530
    %v1725 = vpack.c.b16 %v1533, %v1532
    %1918 = vmatprep.subr.bf16.mxu0 0
    %1919 = vmatpush1.bf16.msra.mxu0 %v1534
    %1920 = vmatprep.subr.bf16.mxu0 0
    %1921 = vmatpush1.bf16.msra.mxu0 %v1535
    %1922 = vmatprep.subr.bf16.mxu0 0
    %1923 = vmatpush1.bf16.msra.mxu0 %v1536
    %1924 = vmatprep.subr.bf16.mxu0 0
    %1925 = vmatpush1.bf16.msra.mxu0 %v1537
    %1926 = vmatprep.subr.bf16.mxu0 0
    %1927 = vmatpush1.bf16.msra.mxu0 %v1538
    %1928 = vmatprep.subr.bf16.mxu0 0
    %1929 = vmatpush1.bf16.msra.mxu0 %v1539
    %1930 = vmatprep.subr.bf16.mxu0 0
    %1931 = vmatpush1.bf16.msra.mxu0 %v1540
    %1932 = vmatprep.subr.bf16.mxu0 0
    %1933 = vmatpush1.bf16.msra.mxu0 %v1541
    %1934 = vmatprep.subr.bf16.mxu0 0
    %1935 = vmatpush1.bf16.msra.mxu0 %v1542
    %1936 = vmatprep.subr.bf16.mxu0 0
    %1937 = vmatpush1.bf16.msra.mxu0 %v1543
    %1938 = vmatprep.subr.bf16.mxu0 0
    %1939 = vmatpush1.bf16.msra.mxu0 %v1544
    %1940 = vmatprep.subr.bf16.mxu0 0
    %1941 = vmatpush1.bf16.msra.mxu0 %v1545
    %1942 = vmatprep.subr.bf16.mxu0 0
    %1943 = vmatpush1.bf16.msra.mxu0 %v1546
    %1944 = vmatprep.subr.bf16.mxu0 0
    %1945 = vmatpush1.bf16.msra.mxu0 %v1547
    %1946 = vmatprep.subr.bf16.mxu0 0
    %1947 = vmatpush1.bf16.msra.mxu0 %v1548
    %1948 = vmatprep.subr.bf16.mxu0 0
    %1949 = vmatpush1.bf16.msra.mxu0 %v1549
    %1950 = vmatprep.mubr.bf16.mxu0 %v352
    %1951 = vmatmul.mubr.bf16.gmra.mrb[0].mxu0 %v351
    %v1952 = vpop.f32.mrb[0].mxu0
    %v1953 = vadd.f32 %v764, %v1952
    %v1954 = vpop.f32.mrb[0].mxu0
    %v1955 = vpop.f32.mrb[0].mxu0
    %v1956 = vpop.f32.mrb[0].mxu0
    %1957 = vdwg.mxu0
    %1958 = vmatprep.subr.bf16.mxu0 0
    %1959 = vmatpush1.bf16.msra.mxu0 %v1550
    %1960 = vmatprep.subr.bf16.mxu0 0
    %1961 = vmatpush1.bf16.msra.mxu0 %v1551
    %1962 = vmatprep.subr.bf16.mxu0 0
    %1963 = vmatpush1.bf16.msra.mxu0 %v1552
    %1964 = vmatprep.subr.bf16.mxu0 0
    %1965 = vmatpush1.bf16.msra.mxu0 %v1553
    %1966 = vmatprep.subr.bf16.mxu0 0
    %1967 = vmatpush1.bf16.msra.mxu0 %v1554
    %1968 = vmatprep.subr.bf16.mxu0 0
    %1969 = vmatpush1.bf16.msra.mxu0 %v1555
    %1970 = vmatprep.subr.bf16.mxu0 0
    %1971 = vmatpush1.bf16.msra.mxu0 %v1556
    %1972 = vmatprep.subr.bf16.mxu0 0
    %1973 = vmatpush1.bf16.msra.mxu0 %v1557
    %1974 = vmatprep.subr.bf16.mxu0 0
    %1975 = vmatpush1.bf16.msra.mxu0 %v1558
    %1976 = vmatprep.subr.bf16.mxu0 0
    %1977 = vmatpush1.bf16.msra.mxu0 %v1559
    %1978 = vmatprep.subr.bf16.mxu0 0
    %1979 = vmatpush1.bf16.msra.mxu0 %v1560
    %1980 = vmatprep.subr.bf16.mxu0 0
    %1981 = vmatpush1.bf16.msra.mxu0 %v1561
    %1982 = vmatprep.subr.bf16.mxu0 0
    %1983 = vmatpush1.bf16.msra.mxu0 %v1562
    %1984 = vmatprep.subr.bf16.mxu0 0
    %1985 = vmatpush1.bf16.msra.mxu0 %v1563
    %1986 = vmatprep.subr.bf16.mxu0 0
    %1987 = vmatpush1.bf16.msra.mxu0 %v1564
    %1988 = vmatprep.subr.bf16.mxu0 0
    %1989 = vmatpush1.bf16.msra.mxu0 %v1565
    %1990 = vmatprep.mubr.bf16.mxu0 %v354
    %1991 = vmatmul.mubr.bf16.gmra.mrb[0].mxu0 %v353
    %v1992 = vpop.f32.mrb[0].mxu0
    %v1993 = vadd.f32 %v1953, %v1992
    %v1994 = vpop.f32.mrb[0].mxu0
    %v1995 = vpop.f32.mrb[0].mxu0
    %v1996 = vpop.f32.mrb[0].mxu0
    %1997 = vdwg.mxu0
    %1998 = vmatprep.subr.bf16.mxu0 0
    %1999 = vmatpush1.bf16.msra.mxu0 %v1566
    %2000 = vmatprep.subr.bf16.mxu0 0
    %2001 = vmatpush1.bf16.msra.mxu0 %v1567
    %2002 = vmatprep.subr.bf16.mxu0 0
    %2003 = vmatpush1.bf16.msra.mxu0 %v1568
    %2004 = vmatprep.subr.bf16.mxu0 0
    %2005 = vmatpush1.bf16.msra.mxu0 %v1569
    %2006 = vmatprep.subr.bf16.mxu0 0
    %2007 = vmatpush1.bf16.msra.mxu0 %v1570
    %2008 = vmatprep.subr.bf16.mxu0 0
    %2009 = vmatpush1.bf16.msra.mxu0 %v1571
    %2010 = vmatprep.subr.bf16.mxu0 0
    %2011 = vmatpush1.bf16.msra.mxu0 %v1572
    %2012 = vmatprep.subr.bf16.mxu0 0
    %2013 = vmatpush1.bf16.msra.mxu0 %v1573
    %2014 = vmatprep.subr.bf16.mxu0 0
    %2015 = vmatpush1.bf16.msra.mxu0 %v1574
    %2016 = vmatprep.subr.bf16.mxu0 0
    %2017 = vmatpush1.bf16.msra.mxu0 %v1575
    %2018 = vmatprep.subr.bf16.mxu0 0
    %2019 = vmatpush1.bf16.msra.mxu0 %v1576
    %2020 = vmatprep.subr.bf16.mxu0 0
    %2021 = vmatpush1.bf16.msra.mxu0 %v1577
    %2022 = vmatprep.subr.bf16.mxu0 0
    %2023 = vmatpush1.bf16.msra.mxu0 %v1578
    %2024 = vmatprep.subr.bf16.mxu0 0
    %2025 = vmatpush1.bf16.msra.mxu0 %v1579
    %2026 = vmatprep.subr.bf16.mxu0 0
    %2027 = vmatpush1.bf16.msra.mxu0 %v1580
    %2028 = vmatprep.subr.bf16.mxu0 0
    %2029 = vmatpush1.bf16.msra.mxu0 %v1581
    %2030 = vmatprep.mubr.bf16.mxu0 %v356
    %2031 = vmatmul.mubr.bf16.gmra.mrb[0].mxu0 %v355
    %v2032 = vpop.f32.mrb[0].mxu0
    %v2033 = vadd.f32 %v1993, %v2032
    %v2034 = vpop.f32.mrb[0].mxu0
    %v2035 = vpop.f32.mrb[0].mxu0
    %v2036 = vpop.f32.mrb[0].mxu0
    %2037 = vdwg.mxu0
    %2038 = vmatprep.subr.bf16.mxu0 0
    %2039 = vmatpush1.bf16.msra.mxu0 %v1582
    %2040 = vmatprep.subr.bf16.mxu0 0
    %2041 = vmatpush1.bf16.msra.mxu0 %v1583
    %2042 = vmatprep.subr.bf16.mxu0 0
    %2043 = vmatpush1.bf16.msra.mxu0 %v1584
    %2044 = vmatprep.subr.bf16.mxu0 0
    %2045 = vmatpush1.bf16.msra.mxu0 %v1585
    %2046 = vmatprep.subr.bf16.mxu0 0
    %2047 = vmatpush1.bf16.msra.mxu0 %v1586
    %2048 = vmatprep.subr.bf16.mxu0 0
    %2049 = vmatpush1.bf16.msra.mxu0 %v1587
    %2050 = vmatprep.subr.bf16.mxu0 0
    %2051 = vmatpush1.bf16.msra.mxu0 %v1588
    %2052 = vmatprep.subr.bf16.mxu0 0
    %2053 = vmatpush1.bf16.msra.mxu0 %v1589
    %2054 = vmatprep.subr.bf16.mxu0 0
    %2055 = vmatpush1.bf16.msra.mxu0 %v1590
    %2056 = vmatprep.subr.bf16.mxu0 0
    %2057 = vmatpush1.bf16.msra.mxu0 %v1591
    %2058 = vmatprep.subr.bf16.mxu0 0
    %2059 = vmatpush1.bf16.msra.mxu0 %v1592
    %2060 = vmatprep.subr.bf16.mxu0 0
    %2061 = vmatpush1.bf16.msra.mxu0 %v1593
    %2062 = vmatprep.subr.bf16.mxu0 0
    %2063 = vmatpush1.bf16.msra.mxu0 %v1594
    %2064 = vmatprep.subr.bf16.mxu0 0
    %2065 = vmatpush1.bf16.msra.mxu0 %v1595
    %2066 = vmatprep.subr.bf16.mxu0 0
    %2067 = vmatpush1.bf16.msra.mxu0 %v1596
    %2068 = vmatprep.subr.bf16.mxu0 0
    %2069 = vmatpush1.bf16.msra.mxu0 %v1597
    %2070 = vmatprep.mubr.bf16.mxu0 %v358
    %2071 = vmatmul.mubr.bf16.gmra.mrb[0].mxu0 %v357
    %v2072 = vpop.f32.mrb[0].mxu0
    %v2073 = vadd.f32 %v2033, %v2072
    %v2074 = vpop.f32.mrb[0].mxu0
    %v2075 = vpop.f32.mrb[0].mxu0
    %v2076 = vpop.f32.mrb[0].mxu0
    %2077 = vdwg.mxu0
    %2078 = vmatprep.subr.bf16.mxu0 0
    %2079 = vmatpush1.bf16.msra.mxu0 %v1598
    %2080 = vmatprep.subr.bf16.mxu0 0
    %2081 = vmatpush1.bf16.msra.mxu0 %v1599
    %2082 = vmatprep.subr.bf16.mxu0 0
    %2083 = vmatpush1.bf16.msra.mxu0 %v1600
    %2084 = vmatprep.subr.bf16.mxu0 0
    %2085 = vmatpush1.bf16.msra.mxu0 %v1601
    %2086 = vmatprep.subr.bf16.mxu0 0
    %2087 = vmatpush1.bf16.msra.mxu0 %v1602
    %2088 = vmatprep.subr.bf16.mxu0 0
    %2089 = vmatpush1.bf16.msra.mxu0 %v1603
    %2090 = vmatprep.subr.bf16.mxu0 0
    %2091 = vmatpush1.bf16.msra.mxu0 %v1604
    %2092 = vmatprep.subr.bf16.mxu0 0
    %2093 = vmatpush1.bf16.msra.mxu0 %v1605
    %2094 = vmatprep.subr.bf16.mxu0 0
    %2095 = vmatpush1.bf16.msra.mxu0 %v1606
    %2096 = vmatprep.subr.bf16.mxu0 0
    %2097 = vmatpush1.bf16.msra.mxu0 %v1607
    %2098 = vmatprep.subr.bf16.mxu0 0
    %2099 = vmatpush1.bf16.msra.mxu0 %v1608
    %2100 = vmatprep.subr.bf16.mxu0 0
    %2101 = vmatpush1.bf16.msra.mxu0 %v1609
    %2102 = vmatprep.subr.bf16.mxu0 0
    %2103 = vmatpush1.bf16.msra.mxu0 %v1610
    %2104 = vmatprep.subr.bf16.mxu0 0
    %2105 = vmatpush1.bf16.msra.mxu0 %v1611
    %2106 = vmatprep.subr.bf16.mxu0 0
    %2107 = vmatpush1.bf16.msra.mxu0 %v1612
    %2108 = vmatprep.subr.bf16.mxu0 0
    %2109 = vmatpush1.bf16.msra.mxu0 %v1613
    %2110 = vmatprep.mubr.bf16.mxu0 %v360
    %2111 = vmatmul.mubr.bf16.gmra.mrb[0].mxu0 %v359
    %v2112 = vpop.f32.mrb[0].mxu0
    %v2113 = vadd.f32 %v2073, %v2112
    %v2114 = vpop.f32.mrb[0].mxu0
    %v2115 = vpop.f32.mrb[0].mxu0
    %v2116 = vpop.f32.mrb[0].mxu0
    %2117 = vdwg.mxu0
    %2118 = vmatprep.subr.bf16.mxu0 0
    %2119 = vmatpush1.bf16.msra.mxu0 %v1614
    %2120 = vmatprep.subr.bf16.mxu0 0
    %2121 = vmatpush1.bf16.msra.mxu0 %v1615
    %2122 = vmatprep.subr.bf16.mxu0 0
    %2123 = vmatpush1.bf16.msra.mxu0 %v1616
    %2124 = vmatprep.subr.bf16.mxu0 0
    %2125 = vmatpush1.bf16.msra.mxu0 %v1617
    %2126 = vmatprep.subr.bf16.mxu0 0
    %2127 = vmatpush1.bf16.msra.mxu0 %v1618
    %2128 = vmatprep.subr.bf16.mxu0 0
    %2129 = vmatpush1.bf16.msra.mxu0 %v1619
    %2130 = vmatprep.subr.bf16.mxu0 0
    %2131 = vmatpush1.bf16.msra.mxu0 %v1620
    %2132 = vmatprep.subr.bf16.mxu0 0
    %2133 = vmatpush1.bf16.msra.mxu0 %v1621
    %2134 = vmatprep.subr.bf16.mxu0 0
    %2135 = vmatpush1.bf16.msra.mxu0 %v1622
    %2136 = vmatprep.subr.bf16.mxu0 0
    %2137 = vmatpush1.bf16.msra.mxu0 %v1623
    %2138 = vmatprep.subr.bf16.mxu0 0
    %2139 = vmatpush1.bf16.msra.mxu0 %v1624
    %2140 = vmatprep.subr.bf16.mxu0 0
    %2141 = vmatpush1.bf16.msra.mxu0 %v1625
    %2142 = vmatprep.subr.bf16.mxu0 0
    %2143 = vmatpush1.bf16.msra.mxu0 %v1626
    %2144 = vmatprep.subr.bf16.mxu0 0
    %2145 = vmatpush1.bf16.msra.mxu0 %v1627
    %2146 = vmatprep.subr.bf16.mxu0 0
    %2147 = vmatpush1.bf16.msra.mxu0 %v1628
    %2148 = vmatprep.subr.bf16.mxu0 0
    %2149 = vmatpush1.bf16.msra.mxu0 %v1629
    %2150 = vmatprep.mubr.bf16.mxu0 %v362
    %2151 = vmatmul.mubr.bf16.gmra.mrb[0].mxu0 %v361
    %v2152 = vpop.f32.mrb[0].mxu0
    %v2153 = vadd.f32 %v2113, %v2152
    %v2154 = vpop.f32.mrb[0].mxu0
    %v2155 = vpop.f32.mrb[0].mxu0
    %v2156 = vpop.f32.mrb[0].mxu0
    %2157 = vdwg.mxu0
    %2158 = vmatprep.subr.bf16.mxu0 0
    %2159 = vmatpush1.bf16.msra.mxu0 %v1630
    %2160 = vmatprep.subr.bf16.mxu0 0
    %2161 = vmatpush1.bf16.msra.mxu0 %v1631
    %2162 = vmatprep.subr.bf16.mxu0 0
    %2163 = vmatpush1.bf16.msra.mxu0 %v1632
    %2164 = vmatprep.subr.bf16.mxu0 0
    %2165 = vmatpush1.bf16.msra.mxu0 %v1633
    %2166 = vmatprep.subr.bf16.mxu0 0
    %2167 = vmatpush1.bf16.msra.mxu0 %v1634
    %2168 = vmatprep.subr.bf16.mxu0 0
    %2169 = vmatpush1.bf16.msra.mxu0 %v1635
    %2170 = vmatprep.subr.bf16.mxu0 0
    %2171 = vmatpush1.bf16.msra.mxu0 %v1636
    %2172 = vmatprep.subr.bf16.mxu0 0
    %2173 = vmatpush1.bf16.msra.mxu0 %v1637
    %2174 = vmatprep.subr.bf16.mxu0 0
    %2175 = vmatpush1.bf16.msra.mxu0 %v1638
    %2176 = vmatprep.subr.bf16.mxu0 0
    %2177 = vmatpush1.bf16.msra.mxu0 %v1639
    %2178 = vmatprep.subr.bf16.mxu0 0
    %2179 = vmatpush1.bf16.msra.mxu0 %v1640
    %2180 = vmatprep.subr.bf16.mxu0 0
    %2181 = vmatpush1.bf16.msra.mxu0 %v1641
    %2182 = vmatprep.subr.bf16.mxu0 0
    %2183 = vmatpush1.bf16.msra.mxu0 %v1642
    %2184 = vmatprep.subr.bf16.mxu0 0
    %2185 = vmatpush1.bf16.msra.mxu0 %v1643
    %2186 = vmatprep.subr.bf16.mxu0 0
    %2187 = vmatpush1.bf16.msra.mxu0 %v1644
    %2188 = vmatprep.subr.bf16.mxu0 0
    %2189 = vmatpush1.bf16.msra.mxu0 %v1645
    %2190 = vmatprep.mubr.bf16.mxu0 %v364
    %2191 = vmatmul.mubr.bf16.gmra.mrb[0].mxu0 %v363
    %v2192 = vpop.f32.mrb[0].mxu0
    %v2193 = vadd.f32 %v2153, %v2192
    %v2194 = vpop.f32.mrb[0].mxu0
    %v2195 = vpop.f32.mrb[0].mxu0
    %v2196 = vpop.f32.mrb[0].mxu0
    %2197 = vdwg.mxu0
    %2198 = vmatprep.subr.bf16.mxu0 0
    %2199 = vmatpush1.bf16.msra.mxu0 %v1646
    %2200 = vmatprep.subr.bf16.mxu0 0
    %2201 = vmatpush1.bf16.msra.mxu0 %v1647
    %2202 = vmatprep.subr.bf16.mxu0 0
    %2203 = vmatpush1.bf16.msra.mxu0 %v1648
    %2204 = vmatprep.subr.bf16.mxu0 0
    %2205 = vmatpush1.bf16.msra.mxu0 %v1649
    %2206 = vmatprep.subr.bf16.mxu0 0
    %2207 = vmatpush1.bf16.msra.mxu0 %v1650
    %2208 = vmatprep.subr.bf16.mxu0 0
    %2209 = vmatpush1.bf16.msra.mxu0 %v1651
    %2210 = vmatprep.subr.bf16.mxu0 0
    %2211 = vmatpush1.bf16.msra.mxu0 %v1652
    %2212 = vmatprep.subr.bf16.mxu0 0
    %2213 = vmatpush1.bf16.msra.mxu0 %v1653
    %2214 = vmatprep.subr.bf16.mxu0 0
    %2215 = vmatpush1.bf16.msra.mxu0 %v1654
    %2216 = vmatprep.subr.bf16.mxu0 0
    %2217 = vmatpush1.bf16.msra.mxu0 %v1655
    %2218 = vmatprep.subr.bf16.mxu0 0
    %2219 = vmatpush1.bf16.msra.mxu0 %v1656
    %2220 = vmatprep.subr.bf16.mxu0 0
    %2221 = vmatpush1.bf16.msra.mxu0 %v1657
    %2222 = vmatprep.subr.bf16.mxu0 0
    %2223 = vmatpush1.bf16.msra.mxu0 %v1658
    %2224 = vmatprep.subr.bf16.mxu0 0
    %2225 = vmatpush1.bf16.msra.mxu0 %v1659
    %2226 = vmatprep.subr.bf16.mxu0 0
    %2227 = vmatpush1.bf16.msra.mxu0 %v1660
    %2228 = vmatprep.subr.bf16.mxu0 0
    %2229 = vmatpush1.bf16.msra.mxu0 %v1661
    %2230 = vmatprep.mubr.bf16.mxu0 %v366
    %2231 = vmatmul.mubr.bf16.gmra.mrb[0].mxu0 %v365
    %v2232 = vpop.f32.mrb[0].mxu0
    %v2233 = vadd.f32 %v2193, %v2232
    %v2234 = vpop.f32.mrb[0].mxu0
    %v2235 = vpop.f32.mrb[0].mxu0
    %v2236 = vpop.f32.mrb[0].mxu0
    %2237 = vdwg.mxu0
    %2238 = vmatprep.subr.bf16.mxu0 0
    %2239 = vmatpush1.bf16.msra.mxu0 %v1662
    %2240 = vmatprep.subr.bf16.mxu0 0
    %2241 = vmatpush1.bf16.msra.mxu0 %v1663
    %2242 = vmatprep.subr.bf16.mxu0 0
    %2243 = vmatpush1.bf16.msra.mxu0 %v1664
    %2244 = vmatprep.subr.bf16.mxu0 0
    %2245 = vmatpush1.bf16.msra.mxu0 %v1665
    %2246 = vmatprep.subr.bf16.mxu0 0
    %2247 = vmatpush1.bf16.msra.mxu0 %v1666
    %2248 = vmatprep.subr.bf16.mxu0 0
    %2249 = vmatpush1.bf16.msra.mxu0 %v1667
    %2250 = vmatprep.subr.bf16.mxu0 0
    %2251 = vmatpush1.bf16.msra.mxu0 %v1668
    %2252 = vmatprep.subr.bf16.mxu0 0
    %2253 = vmatpush1.bf16.msra.mxu0 %v1669
    %2254 = vmatprep.subr.bf16.mxu0 0
    %2255 = vmatpush1.bf16.msra.mxu0 %v1670
    %2256 = vmatprep.subr.bf16.mxu0 0
    %2257 = vmatpush1.bf16.msra.mxu0 %v1671
    %2258 = vmatprep.subr.bf16.mxu0 0
    %2259 = vmatpush1.bf16.msra.mxu0 %v1672
    %2260 = vmatprep.subr.bf16.mxu0 0
    %2261 = vmatpush1.bf16.msra.mxu0 %v1673
    %2262 = vmatprep.subr.bf16.mxu0 0
    %2263 = vmatpush1.bf16.msra.mxu0 %v1674
    %2264 = vmatprep.subr.bf16.mxu0 0
    %2265 = vmatpush1.bf16.msra.mxu0 %v1675
    %2266 = vmatprep.subr.bf16.mxu0 0
    %2267 = vmatpush1.bf16.msra.mxu0 %v1676
    %2268 = vmatprep.subr.bf16.mxu0 0
    %2269 = vmatpush1.bf16.msra.mxu0 %v1677
    %2270 = vmatprep.mubr.bf16.mxu0 %v368
    %2271 = vmatmul.mubr.bf16.gmra.mrb[0].mxu0 %v367
    %v2272 = vpop.f32.mrb[0].mxu0
    %v2273 = vadd.f32 %v2233, %v2272
    %v2274 = vpop.f32.mrb[0].mxu0
    %v2275 = vpop.f32.mrb[0].mxu0
    %v2276 = vpop.f32.mrb[0].mxu0
    %2277 = vdwg.mxu0
    %2278 = vmatprep.subr.bf16.mxu0 0
    %2279 = vmatpush1.bf16.msra.mxu0 %v1678
    %2280 = vmatprep.subr.bf16.mxu0 0
    %2281 = vmatpush1.bf16.msra.mxu0 %v1679
    %2282 = vmatprep.subr.bf16.mxu0 0
    %2283 = vmatpush1.bf16.msra.mxu0 %v1680
    %2284 = vmatprep.subr.bf16.mxu0 0
    %2285 = vmatpush1.bf16.msra.mxu0 %v1681
    %2286 = vmatprep.subr.bf16.mxu0 0
    %2287 = vmatpush1.bf16.msra.mxu0 %v1682
    %2288 = vmatprep.subr.bf16.mxu0 0
    %2289 = vmatpush1.bf16.msra.mxu0 %v1683
    %2290 = vmatprep.subr.bf16.mxu0 0
    %2291 = vmatpush1.bf16.msra.mxu0 %v1684
    %2292 = vmatprep.subr.bf16.mxu0 0
    %2293 = vmatpush1.bf16.msra.mxu0 %v1685
    %2294 = vmatprep.subr.bf16.mxu0 0
    %2295 = vmatpush1.bf16.msra.mxu0 %v1686
    %2296 = vmatprep.subr.bf16.mxu0 0
    %2297 = vmatpush1.bf16.msra.mxu0 %v1687
    %2298 = vmatprep.subr.bf16.mxu0 0
    %2299 = vmatpush1.bf16.msra.mxu0 %v1688
    %2300 = vmatprep.subr.bf16.mxu0 0
    %2301 = vmatpush1.bf16.msra.mxu0 %v1689
    %2302 = vmatprep.subr.bf16.mxu0 0
    %2303 = vmatpush1.bf16.msra.mxu0 %v1690
    %2304 = vmatprep.subr.bf16.mxu0 0
    %2305 = vmatpush1.bf16.msra.mxu0 %v1691
    %2306 = vmatprep.subr.bf16.mxu0 0
    %2307 = vmatpush1.bf16.msra.mxu0 %v1692
    %2308 = vmatprep.subr.bf16.mxu0 0
    %2309 = vmatpush1.bf16.msra.mxu0 %v1693
    %2310 = vmatprep.mubr.bf16.mxu0 %v370
    %2311 = vmatmul.mubr.bf16.gmra.mrb[0].mxu0 %v369
    %v2312 = vpop.f32.mrb[0].mxu0
    %v2313 = vadd.f32 %v2273, %v2312
    %v2314 = vpop.f32.mrb[0].mxu0
    %v2315 = vpop.f32.mrb[0].mxu0
    %v2316 = vpop.f32.mrb[0].mxu0
    %2317 = vdwg.mxu0
    %2318 = vmatprep.subr.bf16.mxu0 0
    %2319 = vmatpush1.bf16.msra.mxu0 %v1694
    %2320 = vmatprep.subr.bf16.mxu0 0
    %2321 = vmatpush1.bf16.msra.mxu0 %v1695
    %2322 = vmatprep.subr.bf16.mxu0 0
    %2323 = vmatpush1.bf16.msra.mxu0 %v1696
    %2324 = vmatprep.subr.bf16.mxu0 0
    %2325 = vmatpush1.bf16.msra.mxu0 %v1697
    %2326 = vmatprep.subr.bf16.mxu0 0
    %2327 = vmatpush1.bf16.msra.mxu0 %v1698
    %2328 = vmatprep.subr.bf16.mxu0 0
    %2329 = vmatpush1.bf16.msra.mxu0 %v1699
    %2330 = vmatprep.subr.bf16.mxu0 0
    %2331 = vmatpush1.bf16.msra.mxu0 %v1700
    %2332 = vmatprep.subr.bf16.mxu0 0
    %2333 = vmatpush1.bf16.msra.mxu0 %v1701
    %2334 = vmatprep.subr.bf16.mxu0 0
    %2335 = vmatpush1.bf16.msra.mxu0 %v1702
    %2336 = vmatprep.subr.bf16.mxu0 0
    %2337 = vmatpush1.bf16.msra.mxu0 %v1703
    %2338 = vmatprep.subr.bf16.mxu0 0
    %2339 = vmatpush1.bf16.msra.mxu0 %v1704
    %2340 = vmatprep.subr.bf16.mxu0 0
    %2341 = vmatpush1.bf16.msra.mxu0 %v1705
    %2342 = vmatprep.subr.bf16.mxu0 0
    %2343 = vmatpush1.bf16.msra.mxu0 %v1706
    %2344 = vmatprep.subr.bf16.mxu0 0
    %2345 = vmatpush1.bf16.msra.mxu0 %v1707
    %2346 = vmatprep.subr.bf16.mxu0 0
    %2347 = vmatpush1.bf16.msra.mxu0 %v1708
    %2348 = vmatprep.subr.bf16.mxu0 0
    %2349 = vmatpush1.bf16.msra.mxu0 %v1709
    %2350 = vmatprep.mubr.bf16.mxu0 %v372
    %2351 = vmatmul.mubr.bf16.gmra.mrb[0].mxu0 %v371
    %v2352 = vpop.f32.mrb[0].mxu0
    %v2353 = vadd.f32 %v2313, %v2352
    %v2354 = vpop.f32.mrb[0].mxu0
    %v2355 = vpop.f32.mrb[0].mxu0
    %v2356 = vpop.f32.mrb[0].mxu0
    %2357 = vdwg.mxu0
    %2358 = vmatprep.subr.bf16.mxu0 0
    %2359 = vmatpush1.bf16.msra.mxu0 %v1710
    %2360 = vmatprep.subr.bf16.mxu0 0
    %2361 = vmatpush1.bf16.msra.mxu0 %v1711
    %2362 = vmatprep.subr.bf16.mxu0 0
    %2363 = vmatpush1.bf16.msra.mxu0 %v1712
    %2364 = vmatprep.subr.bf16.mxu0 0
    %2365 = vmatpush1.bf16.msra.mxu0 %v1713
    %2366 = vmatprep.subr.bf16.mxu0 0
    %2367 = vmatpush1.bf16.msra.mxu0 %v1714
    %2368 = vmatprep.subr.bf16.mxu0 0
    %2369 = vmatpush1.bf16.msra.mxu0 %v1715
    %2370 = vmatprep.subr.bf16.mxu0 0
    %2371 = vmatpush1.bf16.msra.mxu0 %v1716
    %2372 = vmatprep.subr.bf16.mxu0 0
    %2373 = vmatpush1.bf16.msra.mxu0 %v1717
    %2374 = vmatprep.subr.bf16.mxu0 0
    %2375 = vmatpush1.bf16.msra.mxu0 %v1718
    %2376 = vmatprep.subr.bf16.mxu0 0
    %2377 = vmatpush1.bf16.msra.mxu0 %v1719
    %2378 = vmatprep.subr.bf16.mxu0 0
    %2379 = vmatpush1.bf16.msra.mxu0 %v1720
    %2380 = vmatprep.subr.bf16.mxu0 0
    %2381 = vmatpush1.bf16.msra.mxu0 %v1721
    %2382 = vmatprep.subr.bf16.mxu0 0
    %2383 = vmatpush1.bf16.msra.mxu0 %v1722
    %2384 = vmatprep.subr.bf16.mxu0 0
    %2385 = vmatpush1.bf16.msra.mxu0 %v1723
    %2386 = vmatprep.subr.bf16.mxu0 0
    %2387 = vmatpush1.bf16.msra.mxu0 %v1724
    %2388 = vmatprep.subr.bf16.mxu0 0
    %2389 = vmatpush1.bf16.msra.mxu0 %v1725
    %2390 = vmatprep.mubr.bf16.mxu0 %v374
    %2391 = vmatmul.mubr.bf16.gmra.mrb[0].mxu0 %v373
    %v2392 = vpop.f32.mrb[0].mxu0
    %v2393 = vadd.f32 %v2353, %v2392
    %v2394 = vpop.f32.mrb[0].mxu0
    %v2395 = vpop.f32.mrb[0].mxu0
    %v2396 = vpop.f32.mrb[0].mxu0
    %2397 = vdwg.mxu0
    %v2398 = vmax.f32 %v2393, 0.0
    %v2399 = vld [vmem:[#allocation7] sm:$0xff]
    %v2400 = vld [vmem:[#allocation7 + $0x8] sm:$0xff]
    %v2401 = vld [vmem:[#allocation7 + $0x10] sm:$0xff]
    %v2402 = vld [vmem:[#allocation7 + $0x18] sm:$0xff]
    %v2403 = vld [vmem:[#allocation7 + $0x20] sm:$0xff]
    %v2404 = vld [vmem:[#allocation7 + $0x28] sm:$0xff]
    %v2405 = vld [vmem:[#allocation7 + $0x30] sm:$0xff]
    %v2406 = vld [vmem:[#allocation7 + $0x38] sm:$0xff]
    %v2407 = vld [vmem:[#allocation7 + $0x40] sm:$0xff]
    %v2408 = vld [vmem:[#allocation7 + $0x48] sm:$0xff]
    %v2409 = vld [vmem:[#allocation7 + $0x50] sm:$0xff]
    %v2410 = vld [vmem:[#allocation7 + $0x58] sm:$0xff]
    %v2411 = vld [vmem:[#allocation7 + $0x60] sm:$0xff]
    %v2412 = vld [vmem:[#allocation7 + $0x68] sm:$0xff]
    %v2413 = vld [vmem:[#allocation7 + $0x70] sm:$0xff]
    %v2414 = vld [vmem:[#allocation7 + $0x78] sm:$0xff]
    %v2415 = vld [vmem:[%s4] sm:$0x1]
    %v2417 = vlaneseq
    %v2418 = vshrl.u32 %v2417, 7
    %v2419 = vsub.s32 0, %v2418
    %v2420 = vrot.slane %v2415, %v2419
    %2422 = vmatprep.subr.mxu0 0.0
    %2423 = vmatpush1.msra.mxu0 %v2399
    %2424 = vmatprep.subr.mxu0 0.0
    %2425 = vmatpush1.msra.mxu0 %v2400
    %2426 = vmatprep.subr.mxu0 0.0
    %2427 = vmatpush1.msra.mxu0 %v2401
    %2428 = vmatprep.subr.mxu0 0.0
    %2429 = vmatpush1.msra.mxu0 %v2402
    %2430 = vmatprep.subr.mxu0 0.0
    %2431 = vmatpush1.msra.mxu0 %v2403
    %2432 = vmatprep.subr.mxu0 0.0
    %2433 = vmatpush1.msra.mxu0 %v2404
    %2434 = vmatprep.subr.mxu0 0.0
    %2435 = vmatpush1.msra.mxu0 %v2405
    %2436 = vmatprep.subr.mxu0 0.0
    %2437 = vmatpush1.msra.mxu0 %v2406
    %2438 = vmatprep.subr.mxu0 0.0
    %2439 = vmatpush1.msra.mxu0 %v2407
    %2440 = vmatprep.subr.mxu0 0.0
    %2441 = vmatpush1.msra.mxu0 %v2408
    %2442 = vmatprep.subr.mxu0 0.0
    %2443 = vmatpush1.msra.mxu0 %v2409
    %2444 = vmatprep.subr.mxu0 0.0
    %2445 = vmatpush1.msra.mxu0 %v2410
    %2446 = vmatprep.subr.mxu0 0.0
    %2447 = vmatpush1.msra.mxu0 %v2411
    %2448 = vmatprep.subr.mxu0 0.0
    %2449 = vmatpush1.msra.mxu0 %v2412
    %2450 = vmatprep.subr.mxu0 0.0
    %2451 = vmatpush1.msra.mxu0 %v2413
    %2452 = vmatprep.subr.mxu0 0.0
    %2453 = vmatpush1.msra.mxu0 %v2414
    %2454 = vmatprep.subr.mxu0 0.0
    %2455 = vmatpush1.msra.mxu0 0.0
    %2456 = vmatprep.subr.mxu0 0.0
    %2457 = vmatpush1.msra.mxu0 0.0
    %2458 = vmatprep.subr.mxu0 0.0
    %2459 = vmatpush1.msra.mxu0 0.0
    %2460 = vmatprep.subr.mxu0 0.0
    %2461 = vmatpush1.msra.mxu0 0.0
    %2462 = vmatprep.subr.mxu0 0.0
    %2463 = vmatpush1.msra.mxu0 0.0
    %2464 = vmatprep.subr.mxu0 0.0
    %2465 = vmatpush1.msra.mxu0 0.0
    %2466 = vmatprep.subr.mxu0 0.0
    %2467 = vmatpush1.msra.mxu0 0.0
    %2468 = vmatprep.subr.mxu0 0.0
    %2469 = vmatpush1.msra.mxu0 0.0
    %2470 = vmatprep.subr.mxu0 0.0
    %2471 = vmatpush1.msra.mxu0 0.0
    %2472 = vmatprep.subr.mxu0 0.0
    %2473 = vmatpush1.msra.mxu0 0.0
    %2474 = vmatprep.subr.mxu0 0.0
    %2475 = vmatpush1.msra.mxu0 0.0
    %2476 = vmatprep.subr.mxu0 0.0
    %2477 = vmatpush1.msra.mxu0 0.0
    %2478 = vmatprep.subr.mxu0 0.0
    %2479 = vmatpush1.msra.mxu0 0.0
    %2480 = vmatprep.subr.mxu0 0.0
    %2481 = vmatpush1.msra.mxu0 0.0
    %2482 = vmatprep.subr.mxu0 0.0
    %2483 = vmatpush1.msra.mxu0 0.0
    %2484 = vmatprep.subr.mxu0 0.0
    %2485 = vmatpush1.msra.mxu0 0.0
    %2486 = vmatprep.mubr.f32.mxu0 0.0
    %2487 = vmatmul.mubr.f32.gmra.mrb[0].mxu0 %v2398
    %v2488 = vpop.f32.mrb[0].mxu0
    %v2489 = vadd.f32 %v2420, %v2488
    %v2490 = vpop.f32.mrb[0].mxu0
    %2491 = vdwg.mxu0
    %2492 = vst [vmem:[#allocation8] sm:$0xff] %v2489
    // Predicated region
    $region34: #{tpu_custom_call.1} parent=1 // pred_check
      _
    $region35: #{tpu_custom_call.1} parent=1 // pred_check_branch
      %2494 = sbr.rel (0) target = $region37
    $region36: #{tpu_custom_call.1} parent=1 // pred_region
      %s2496 = ssub.s32 128, 128
      %2497 = vsyncadd [#allocation4], %s2496
      %s2499 = sshll.u32 [#allocation8], 4
      %s2500 = int_to_ptr.vmem [resolvable:$true] %s2499
      %2502 = dma.vmem_to_hbm [thread:$0]  %s2500, 128, %s5, [#allocation4]
    $region37: #{tpu_custom_call.1} parent=1 // pred_fallthru
      _
    // Predicated region
    $region38: #{tpu_custom_call.1} parent=1 // pred_check
      _
    $region39: #{tpu_custom_call.1} parent=1 // pred_check_branch
      %2504 = sbr.rel (0) target = $region41
    $region40: #{tpu_custom_call.1} parent=1 // pred_region
      %2505 = dma.done [#allocation4], 128
    $region41: #{tpu_custom_call.1} parent=1 // pred_fallthru
      _
    %2506 = vsyncpa [#allocation3], 1
    %2507 = vsyncpa [#allocation6], 1
    %2508 = vsyncpa [#allocation4], 1

</llo_original>
